<compile_context>
chip_gen: v7x
topology: tpu7x:2x2x1
jax: 0.10.0
libtpu: 0.0.40
codegen_flags: <defaults>
</compile_context>

<pallas_src>
import math
import functools

import jax
import jax.numpy as jnp
from jax.experimental import pallas as pl
from jax.experimental.pallas import tpu as pltpu


def _lcm_list(vals):
    l = 1
    for v in vals:
        l = l * v // math.gcd(l, v)
    return l


# ----------------------------------------------------------------------------
# Fused kernel over the whole ResidualDRNN stack.
# ----------------------------------------------------------------------------
def _make_stack_kernel(dilation_groups, Tp, Bp, H):
    n_cells = sum(len(g) for g in dilation_groups)

    def kernel(*refs):
        x_ref = refs[0]
        w_refs = refs[1:1 + 3 * n_cells]
        out_ref = refs[1 + 3 * n_cells]
        hbuf_ref = refs[2 + 3 * n_cells]          # VMEM scratch (Tp*Bp, H)

        act = x_ref[...]                          # (Tp*Bp, D0) f32, row=t*Bp+b
        ci = 0
        for layer_num, dils in enumerate(dilation_groups):
            layer_in = act                        # residual for this DRNN layer
            for rate in dils:
                wih_t = w_refs[3 * ci + 0][...]   # (Din, 4H) bf16, [i,f,o|g]
                whh_t = w_refs[3 * ci + 1][...]   # (H,   4H) bf16, [i,f,o|g]
                bias = w_refs[3 * ci + 2][...]    # (1,   4H) f32
                Td = Tp // rate
                Bd = rate * Bp                    # dilated batch

                # Hoisted input projection: one bf16 MXU matmul, f32 accum,
                # off the serial path.
                gx = jnp.dot(act.astype(jnp.bfloat16), wih_t,
                             preferred_element_type=jnp.float32) + bias

                h = jnp.zeros((Bd, H), jnp.float32)
                c = jnp.zeros((Bd, H), jnp.float32)
                for k in range(Td):               # static unroll, Td small
                    g = gx[k * Bd:(k + 1) * Bd, :] + jnp.dot(
                        h.astype(jnp.bfloat16), whh_t,
                        preferred_element_type=jnp.float32)
                    # gate columns pre-permuted to [i, f, o | g]:
                    # one wide sigmoid + one tanh instead of 4 narrow ops.
                    sg = jax.nn.sigmoid(g[:, :3 * H])
                    i_g = sg[:, 0 * H:1 * H]
                    f_g = sg[:, 1 * H:2 * H]
                    o_g = sg[:, 2 * H:3 * H]
                    g_g = jnp.tanh(g[:, 3 * H:])
                    c = f_g * c + i_g * g_g
                    h = o_g * jnp.tanh(c)
                    # static-offset store; block k of Bd rows reproduces the
                    # time-major flat layout exactly:
                    # dilated (k, j*Bp+b) == flat row (k*rate+j)*Bp + b.
                    hbuf_ref[pl.ds(k * Bd, Bd), :] = h
                act = hbuf_ref[...]               # (Tp*Bp, H)
                ci += 1
            if layer_num > 0:                     # residual add (skipped on L0)
                act = act + layer_in
        out_ref[...] = act                        # single final writeback
    return kernel


# ----------------------------------------------------------------------------
# Wrapper: pad, prep weights (transpose / gate-reorder / bf16), launch kernel.
# ----------------------------------------------------------------------------
def _prepare_params(stack_params, hsize):
    """PyTorch-layout (w_ih, w_hh, b_ih, b_hh) -> kernel layout.

    Transposes for right-multiplication, reorders the 4H gate dim from
    PyTorch's [i,f,g,o] to [i,f,o,g], combines biases, casts weights to bf16
    (biases stay f32)."""
    H = hsize
    perm = jnp.concatenate([
        jnp.arange(0 * H, 1 * H),     # i
        jnp.arange(1 * H, 2 * H),     # f
        jnp.arange(3 * H, 4 * H),     # o
        jnp.arange(2 * H, 3 * H)])    # g
    prepped = []
    for cells in stack_params:
        row = []
        for (w_ih, w_hh, b_ih, b_hh) in cells:
            wih_t = w_ih.T[:, perm].astype(jnp.bfloat16)
            whh_t = w_hh.T[:, perm].astype(jnp.bfloat16)
            bias = (b_ih + b_hh)[perm][None, :].astype(jnp.float32)
            row.append((wih_t, whh_t, bias))
        prepped.append(row)
    return prepped


def residual_drnn_forward(x, stack_params, dilation_groups):
    """x: (T, B, D0) f32 (time-major, batch_first=False).  Returns (T, B, H)."""
    T, B, D0 = x.shape
    H = stack_params[0][0][1].shape[1]            # w_hh: (4H, H)

    # One-time padding in the wrapper:
    #  * time padded to a multiple of lcm(rates) (padded trailing timesteps
    #    never influence t < T in a dilated recurrence),
    #  * batch padded to a multiple of 8 (f32 sublanes); padded rows are
    #    independent trajectories dropped at the end.
    rates = [r for grp in dilation_groups for r in grp]
    L = _lcm_list(rates)
    Tp = -(-T // L) * L
    Bp = max(8, ((B + 7) // 8) * 8)
    if Tp != T or Bp != B:
        x = jnp.pad(x, ((0, Tp - T), (0, Bp - B), (0, 0)))
    x_flat = x.reshape(Tp * Bp, D0)               # rows = t*Bp + b

    params = _prepare_params(stack_params, H)
    flat_in = [x_flat]
    for cells in params:
        for wih_t, whh_t, b in cells:
            flat_in += [wih_t, whh_t, b]

    kernel = _make_stack_kernel(
        tuple(tuple(g) for g in dilation_groups), Tp, Bp, H)

    # Advisory cost hint (projection-dominated flops; 5 transcendentals per
    # hidden element per cell).
    n_rows = Tp * Bp
    flops = 0
    trans = 0
    for grp_num, dils in enumerate(dilation_groups):
        for cell_num in range(len(dils)):
            din = D0 if (grp_num == 0 and cell_num == 0) else H
            flops += 2 * n_rows * 4 * H * (din + H)
            trans += 5 * n_rows * H
    bytes_accessed = 4 * (x_flat.size + n_rows * H) + sum(
        int(a.size) * a.dtype.itemsize
        for cells in params for cell in cells for a in cell)

    out_flat = pl.pallas_call(
        kernel,
        out_shape=jax.ShapeDtypeStruct((Tp * Bp, H), jnp.float32),
        in_specs=[pl.BlockSpec(memory_space=pltpu.MemorySpace.VMEM)
                  for _ in flat_in],
        out_specs=pl.BlockSpec(memory_space=pltpu.MemorySpace.VMEM),
        scratch_shapes=[pltpu.VMEM((Tp * Bp, H), jnp.float32)],
        cost_estimate=pl.CostEstimate(
            flops=flops, transcendentals=trans, bytes_accessed=bytes_accessed),
    )(*flat_in)

    return out_flat.reshape(Tp, Bp, H)[:T, :B, :]


# ----------------------------------------------------------------------------
# Pure-JAX reference (mirrors PyTorch DRNN/LSTM semantics, [i,f,g,o] order).
# ----------------------------------------------------------------------------
def _reference_forward(x, stack_params, dilation_groups):
    hi = jax.lax.Precision.HIGHEST
    inp = x
    out = x
    for ln, (cells, dils) in enumerate(zip(stack_params, dilation_groups)):
        residual = inp
        seq = inp
        for (w_ih, w_hh, b_ih, b_hh), rate in zip(cells, dils):
            T, B, D = seq.shape
            H = w_hh.shape[1]
            Td = -(-T // rate)
            Tpad = Td * rate
            if Tpad != T:
                seq = jnp.concatenate(
                    [seq, jnp.zeros((Tpad - T, B, D), seq.dtype)], axis=0)
            xd = seq.reshape(Td, rate * B, D)
            h = jnp.zeros((rate * B, H), jnp.float32)
            c = jnp.zeros((rate * B, H), jnp.float32)
            bias = b_ih + b_hh
            outs = []
            for k in range(Td):
                g = (jnp.dot(xd[k], w_ih.T, precision=hi)
                     + jnp.dot(h, w_hh.T, precision=hi) + bias)
                i_g = jax.nn.sigmoid(g[:, :H])
                f_g = jax.nn.sigmoid(g[:, H:2 * H])
                g_g = jnp.tanh(g[:, 2 * H:3 * H])
                o_g = jax.nn.sigmoid(g[:, 3 * H:])
                c = f_g * c + i_g * g_g
                h = o_g * jnp.tanh(c)
                outs.append(h)
            seq = jnp.stack(outs, 0).reshape(Tpad, B, H)[:T]
        out = seq
        if ln > 0:
            out = out + residual
        inp = out
    return out


# ----------------------------------------------------------------------------
# Deterministic parameter init, PyTorch nn.LSTM layout & U(-1/sqrt(H),1/sqrt(H)).
# ----------------------------------------------------------------------------
def init_params(key, dilation_groups, input_size0, hsize):
    stack = []
    k = 1.0 / math.sqrt(hsize)
    for grp_num, dils in enumerate(dilation_groups):
        n_in_first = input_size0 if grp_num == 0 else hsize
        cells = []
        for cell_num in range(len(dils)):
            d_in = n_in_first if cell_num == 0 else hsize
            key, k1, k2, k3, k4 = jax.random.split(key, 5)
            w_ih = jax.random.uniform(k1, (4 * hsize, d_in), jnp.float32, -k, k)
            w_hh = jax.random.uniform(k2, (4 * hsize, hsize), jnp.float32, -k, k)
            b_ih = jax.random.uniform(k3, (4 * hsize,), jnp.float32, -k, k)
            b_hh = jax.random.uniform(k4, (4 * hsize,), jnp.float32, -k, k)
            cells.append((w_ih, w_hh, b_ih, b_hh))
        stack.append(cells)
    return stack


if __name__ == "__main__":
    DILATION_GROUPS = ((1, 2), (2, 4))
    INPUT_WINDOW_SIZE = 15
    NUM_CATEGORIES = 1
    STATE_HSIZE = 32
    SEQ = 8
    BATCH = 2

    in_size = INPUT_WINDOW_SIZE + NUM_CATEGORIES  # 16

    key = jax.random.PRNGKey(0)
    key, pkey, xkey = jax.random.split(key, 3)
    params = init_params(pkey, DILATION_GROUPS, in_size, STATE_HSIZE)

    # layout: (seq_len, batch, input_window_size + num_of_categories)
    x = jax.random.normal(xkey, (SEQ, BATCH, in_size), jnp.float32)

    fwd = jax.jit(functools.partial(
        residual_drnn_forward, dilation_groups=DILATION_GROUPS))
    out = jax.block_until_ready(fwd(x, params))

    assert out.shape == (SEQ, BATCH, STATE_HSIZE)
    assert bool(jnp.all(jnp.isfinite(out)))

    ref = _reference_forward(x, params, DILATION_GROUPS)
    max_err = float(jnp.max(jnp.abs(out - ref)))
    # bf16 matmul operands vs HIGHEST-precision f32 reference -> loose tolerance
    assert bool(jnp.allclose(out, ref, atol=2e-2, rtol=2e-2)), max_err

    print("KERNEL_OK")
</pallas_src>

<mosaic_0001>
module attributes {stable_mosaic.version = 11 : i64} {
  func.func @kernel(%arg0: memref<64x16xf32, #tpu.memory_space<vmem>>, %arg1: memref<16x128xbf16, #tpu.memory_space<vmem>>, %arg2: memref<32x128xbf16, #tpu.memory_space<vmem>>, %arg3: memref<1x128xf32, #tpu.memory_space<vmem>>, %arg4: memref<32x128xbf16, #tpu.memory_space<vmem>>, %arg5: memref<32x128xbf16, #tpu.memory_space<vmem>>, %arg6: memref<1x128xf32, #tpu.memory_space<vmem>>, %arg7: memref<32x128xbf16, #tpu.memory_space<vmem>>, %arg8: memref<32x128xbf16, #tpu.memory_space<vmem>>, %arg9: memref<1x128xf32, #tpu.memory_space<vmem>>, %arg10: memref<32x128xbf16, #tpu.memory_space<vmem>>, %arg11: memref<32x128xbf16, #tpu.memory_space<vmem>>, %arg12: memref<1x128xf32, #tpu.memory_space<vmem>>, %arg13: memref<64x32xf32, #tpu.memory_space<vmem>>, %arg14: memref<64x32xf32, #tpu.memory_space<vmem>>) attributes {dimension_semantics = [], scalar_prefetch = 0 : i64, scratch_operands = 1 : i64, tpu.core_type = #tpu.core_type<tc>} {
    %c0 = arith.constant 0 : index
    %c0_0 = arith.constant 0 : index
    %0 = vector.load %arg0[%c0, %c0_0] : memref<64x16xf32, #tpu.memory_space<vmem>>, vector<64x16xf32>
    %c0_1 = arith.constant 0 : index
    %c0_2 = arith.constant 0 : index
    %1 = vector.load %arg1[%c0_1, %c0_2] : memref<16x128xbf16, #tpu.memory_space<vmem>>, vector<16x128xbf16>
    %c0_3 = arith.constant 0 : index
    %c0_4 = arith.constant 0 : index
    %2 = vector.load %arg2[%c0_3, %c0_4] : memref<32x128xbf16, #tpu.memory_space<vmem>>, vector<32x128xbf16>
    %c0_5 = arith.constant 0 : index
    %c0_6 = arith.constant 0 : index
    %3 = vector.load %arg3[%c0_5, %c0_6] : memref<1x128xf32, #tpu.memory_space<vmem>>, vector<1x128xf32>
    %4 = arith.truncf %0 : vector<64x16xf32> to vector<64x16xbf16>
    %cst = arith.constant dense<0.000000e+00> : vector<64x128xf32>
    %5 = tpu.matmul %4, %1, %cst {dimension_numbers = #tpu.dot_dimension_numbers<[1], [0], [0], [1], [0, 0, 1, 1], [], []>} : vector<64x16xbf16>, vector<16x128xbf16>, vector<64x128xf32> -> vector<64x128xf32>
    %6 = vector.broadcast %3 : vector<1x128xf32> to vector<64x128xf32>
    %7 = arith.addf %5, %6 : vector<64x128xf32>
    %cst_7 = arith.constant 0.000000e+00 : f32
    %8 = vector.broadcast %cst_7 : f32 to vector<8x32xf32>
    %cst_8 = arith.constant 0.000000e+00 : f32
    %9 = vector.broadcast %cst_8 : f32 to vector<8x32xf32>
    %10 = vector.extract_strided_slice %7 {offsets = [0, 0], sizes = [8, 128], strides = [1, 1]} : vector<64x128xf32> to vector<8x128xf32>
    %11 = arith.truncf %8 : vector<8x32xf32> to vector<8x32xbf16>
    %cst_9 = arith.constant dense<0.000000e+00> : vector<8x128xf32>
    %12 = tpu.matmul %11, %2, %cst_9 {dimension_numbers = #tpu.dot_dimension_numbers<[1], [0], [0], [1], [0, 0, 1, 1], [], []>} : vector<8x32xbf16>, vector<32x128xbf16>, vector<8x128xf32> -> vector<8x128xf32>
    %13 = arith.addf %10, %12 : vector<8x128xf32>
    %14 = vector.extract_strided_slice %13 {offsets = [0, 0], sizes = [8, 96], strides = [1, 1]} : vector<8x128xf32> to vector<8x96xf32>
    %15 = arith.negf %14 : vector<8x96xf32>
    %16 = math.exp %15 : vector<8x96xf32>
    %cst_10 = arith.constant 1.000000e+00 : f32
    %17 = vector.broadcast %cst_10 : f32 to vector<8x96xf32>
    %18 = arith.addf %17, %16 : vector<8x96xf32>
    %19 = arith.divf %17, %18 : vector<8x96xf32>
    %20 = vector.extract_strided_slice %19 {offsets = [0, 0], sizes = [8, 32], strides = [1, 1]} : vector<8x96xf32> to vector<8x32xf32>
    %21 = vector.extract_strided_slice %19 {offsets = [0, 32], sizes = [8, 32], strides = [1, 1]} : vector<8x96xf32> to vector<8x32xf32>
    %22 = vector.extract_strided_slice %19 {offsets = [0, 64], sizes = [8, 32], strides = [1, 1]} : vector<8x96xf32> to vector<8x32xf32>
    %23 = vector.extract_strided_slice %13 {offsets = [0, 96], sizes = [8, 32], strides = [1, 1]} : vector<8x128xf32> to vector<8x32xf32>
    %24 = math.tanh %23 : vector<8x32xf32>
    %25 = arith.mulf %21, %9 : vector<8x32xf32>
    %26 = arith.mulf %20, %24 : vector<8x32xf32>
    %27 = arith.addf %25, %26 : vector<8x32xf32>
    %28 = math.tanh %27 : vector<8x32xf32>
    %29 = arith.mulf %22, %28 : vector<8x32xf32>
    %c0_11 = arith.constant 0 : index
    %c0_12 = arith.constant 0 : index
    %30 = vector.load %arg14[%c0_11, %c0_12] : memref<64x32xf32, #tpu.memory_space<vmem>>, vector<8x32xf32>
    tpu.vector_store %arg14[%c0_11, %c0_12], %29 {strides = array<i32>} : memref<64x32xf32, #tpu.memory_space<vmem>>, vector<8x32xf32>,
    %31 = vector.extract_strided_slice %7 {offsets = [8, 0], sizes = [8, 128], strides = [1, 1]} : vector<64x128xf32> to vector<8x128xf32>
    %32 = arith.truncf %29 : vector<8x32xf32> to vector<8x32xbf16>
    %cst_13 = arith.constant dense<0.000000e+00> : vector<8x128xf32>
    %33 = tpu.matmul %32, %2, %cst_13 {dimension_numbers = #tpu.dot_dimension_numbers<[1], [0], [0], [1], [0, 0, 1, 1], [], []>} : vector<8x32xbf16>, vector<32x128xbf16>, vector<8x128xf32> -> vector<8x128xf32>
    %34 = arith.addf %31, %33 : vector<8x128xf32>
    %35 = vector.extract_strided_slice %34 {offsets = [0, 0], sizes = [8, 96], strides = [1, 1]} : vector<8x128xf32> to vector<8x96xf32>
    %36 = arith.negf %35 : vector<8x96xf32>
    %37 = math.exp %36 : vector<8x96xf32>
    %cst_14 = arith.constant 1.000000e+00 : f32
    %38 = vector.broadcast %cst_14 : f32 to vector<8x96xf32>
    %39 = arith.addf %38, %37 : vector<8x96xf32>
    %40 = arith.divf %38, %39 : vector<8x96xf32>
    %41 = vector.extract_strided_slice %40 {offsets = [0, 0], sizes = [8, 32], strides = [1, 1]} : vector<8x96xf32> to vector<8x32xf32>
    %42 = vector.extract_strided_slice %40 {offsets = [0, 32], sizes = [8, 32], strides = [1, 1]} : vector<8x96xf32> to vector<8x32xf32>
    %43 = vector.extract_strided_slice %40 {offsets = [0, 64], sizes = [8, 32], strides = [1, 1]} : vector<8x96xf32> to vector<8x32xf32>
    %44 = vector.extract_strided_slice %34 {offsets = [0, 96], sizes = [8, 32], strides = [1, 1]} : vector<8x128xf32> to vector<8x32xf32>
    %45 = math.tanh %44 : vector<8x32xf32>
    %46 = arith.mulf %42, %27 : vector<8x32xf32>
    %47 = arith.mulf %41, %45 : vector<8x32xf32>
    %48 = arith.addf %46, %47 : vector<8x32xf32>
    %49 = math.tanh %48 : vector<8x32xf32>
    %50 = arith.mulf %43, %49 : vector<8x32xf32>
    %c8 = arith.constant 8 : index
    %c0_15 = arith.constant 0 : index
    %51 = vector.load %arg14[%c8, %c0_15] : memref<64x32xf32, #tpu.memory_space<vmem>>, vector<8x32xf32>
    tpu.vector_store %arg14[%c8, %c0_15], %50 {strides = array<i32>} : memref<64x32xf32, #tpu.memory_space<vmem>>, vector<8x32xf32>,
    %52 = vector.extract_strided_slice %7 {offsets = [16, 0], sizes = [8, 128], strides = [1, 1]} : vector<64x128xf32> to vector<8x128xf32>
    %53 = arith.truncf %50 : vector<8x32xf32> to vector<8x32xbf16>
    %cst_16 = arith.constant dense<0.000000e+00> : vector<8x128xf32>
    %54 = tpu.matmul %53, %2, %cst_16 {dimension_numbers = #tpu.dot_dimension_numbers<[1], [0], [0], [1], [0, 0, 1, 1], [], []>} : vector<8x32xbf16>, vector<32x128xbf16>, vector<8x128xf32> -> vector<8x128xf32>
    %55 = arith.addf %52, %54 : vector<8x128xf32>
    %56 = vector.extract_strided_slice %55 {offsets = [0, 0], sizes = [8, 96], strides = [1, 1]} : vector<8x128xf32> to vector<8x96xf32>
    %57 = arith.negf %56 : vector<8x96xf32>
    %58 = math.exp %57 : vector<8x96xf32>
    %cst_17 = arith.constant 1.000000e+00 : f32
    %59 = vector.broadcast %cst_17 : f32 to vector<8x96xf32>
    %60 = arith.addf %59, %58 : vector<8x96xf32>
    %61 = arith.divf %59, %60 : vector<8x96xf32>
    %62 = vector.extract_strided_slice %61 {offsets = [0, 0], sizes = [8, 32], strides = [1, 1]} : vector<8x96xf32> to vector<8x32xf32>
    %63 = vector.extract_strided_slice %61 {offsets = [0, 32], sizes = [8, 32], strides = [1, 1]} : vector<8x96xf32> to vector<8x32xf32>
    %64 = vector.extract_strided_slice %61 {offsets = [0, 64], sizes = [8, 32], strides = [1, 1]} : vector<8x96xf32> to vector<8x32xf32>
    %65 = vector.extract_strided_slice %55 {offsets = [0, 96], sizes = [8, 32], strides = [1, 1]} : vector<8x128xf32> to vector<8x32xf32>
    %66 = math.tanh %65 : vector<8x32xf32>
    %67 = arith.mulf %63, %48 : vector<8x32xf32>
    %68 = arith.mulf %62, %66 : vector<8x32xf32>
    %69 = arith.addf %67, %68 : vector<8x32xf32>
    %70 = math.tanh %69 : vector<8x32xf32>
    %71 = arith.mulf %64, %70 : vector<8x32xf32>
    %c16 = arith.constant 16 : index
    %c0_18 = arith.constant 0 : index
    %72 = vector.load %arg14[%c16, %c0_18] : memref<64x32xf32, #tpu.memory_space<vmem>>, vector<8x32xf32>
    tpu.vector_store %arg14[%c16, %c0_18], %71 {strides = array<i32>} : memref<64x32xf32, #tpu.memory_space<vmem>>, vector<8x32xf32>,
    %73 = vector.extract_strided_slice %7 {offsets = [24, 0], sizes = [8, 128], strides = [1, 1]} : vector<64x128xf32> to vector<8x128xf32>
    %74 = arith.truncf %71 : vector<8x32xf32> to vector<8x32xbf16>
    %cst_19 = arith.constant dense<0.000000e+00> : vector<8x128xf32>
    %75 = tpu.matmul %74, %2, %cst_19 {dimension_numbers = #tpu.dot_dimension_numbers<[1], [0], [0], [1], [0, 0, 1, 1], [], []>} : vector<8x32xbf16>, vector<32x128xbf16>, vector<8x128xf32> -> vector<8x128xf32>
    %76 = arith.addf %73, %75 : vector<8x128xf32>
    %77 = vector.extract_strided_slice %76 {offsets = [0, 0], sizes = [8, 96], strides = [1, 1]} : vector<8x128xf32> to vector<8x96xf32>
    %78 = arith.negf %77 : vector<8x96xf32>
    %79 = math.exp %78 : vector<8x96xf32>
    %cst_20 = arith.constant 1.000000e+00 : f32
    %80 = vector.broadcast %cst_20 : f32 to vector<8x96xf32>
    %81 = arith.addf %80, %79 : vector<8x96xf32>
    %82 = arith.divf %80, %81 : vector<8x96xf32>
    %83 = vector.extract_strided_slice %82 {offsets = [0, 0], sizes = [8, 32], strides = [1, 1]} : vector<8x96xf32> to vector<8x32xf32>
    %84 = vector.extract_strided_slice %82 {offsets = [0, 32], sizes = [8, 32], strides = [1, 1]} : vector<8x96xf32> to vector<8x32xf32>
    %85 = vector.extract_strided_slice %82 {offsets = [0, 64], sizes = [8, 32], strides = [1, 1]} : vector<8x96xf32> to vector<8x32xf32>
    %86 = vector.extract_strided_slice %76 {offsets = [0, 96], sizes = [8, 32], strides = [1, 1]} : vector<8x128xf32> to vector<8x32xf32>
    %87 = math.tanh %86 : vector<8x32xf32>
    %88 = arith.mulf %84, %69 : vector<8x32xf32>
    %89 = arith.mulf %83, %87 : vector<8x32xf32>
    %90 = arith.addf %88, %89 : vector<8x32xf32>
    %91 = math.tanh %90 : vector<8x32xf32>
    %92 = arith.mulf %85, %91 : vector<8x32xf32>
    %c24 = arith.constant 24 : index
    %c0_21 = arith.constant 0 : index
    %93 = vector.load %arg14[%c24, %c0_21] : memref<64x32xf32, #tpu.memory_space<vmem>>, vector<8x32xf32>
    tpu.vector_store %arg14[%c24, %c0_21], %92 {strides = array<i32>} : memref<64x32xf32, #tpu.memory_space<vmem>>, vector<8x32xf32>,
    %94 = vector.extract_strided_slice %7 {offsets = [32, 0], sizes = [8, 128], strides = [1, 1]} : vector<64x128xf32> to vector<8x128xf32>
    %95 = arith.truncf %92 : vector<8x32xf32> to vector<8x32xbf16>
    %cst_22 = arith.constant dense<0.000000e+00> : vector<8x128xf32>
    %96 = tpu.matmul %95, %2, %cst_22 {dimension_numbers = #tpu.dot_dimension_numbers<[1], [0], [0], [1], [0, 0, 1, 1], [], []>} : vector<8x32xbf16>, vector<32x128xbf16>, vector<8x128xf32> -> vector<8x128xf32>
    %97 = arith.addf %94, %96 : vector<8x128xf32>
    %98 = vector.extract_strided_slice %97 {offsets = [0, 0], sizes = [8, 96], strides = [1, 1]} : vector<8x128xf32> to vector<8x96xf32>
    %99 = arith.negf %98 : vector<8x96xf32>
    %100 = math.exp %99 : vector<8x96xf32>
    %cst_23 = arith.constant 1.000000e+00 : f32
    %101 = vector.broadcast %cst_23 : f32 to vector<8x96xf32>
    %102 = arith.addf %101, %100 : vector<8x96xf32>
    %103 = arith.divf %101, %102 : vector<8x96xf32>
    %104 = vector.extract_strided_slice %103 {offsets = [0, 0], sizes = [8, 32], strides = [1, 1]} : vector<8x96xf32> to vector<8x32xf32>
    %105 = vector.extract_strided_slice %103 {offsets = [0, 32], sizes = [8, 32], strides = [1, 1]} : vector<8x96xf32> to vector<8x32xf32>
    %106 = vector.extract_strided_slice %103 {offsets = [0, 64], sizes = [8, 32], strides = [1, 1]} : vector<8x96xf32> to vector<8x32xf32>
    %107 = vector.extract_strided_slice %97 {offsets = [0, 96], sizes = [8, 32], strides = [1, 1]} : vector<8x128xf32> to vector<8x32xf32>
    %108 = math.tanh %107 : vector<8x32xf32>
    %109 = arith.mulf %105, %90 : vector<8x32xf32>
    %110 = arith.mulf %104, %108 : vector<8x32xf32>
    %111 = arith.addf %109, %110 : vector<8x32xf32>
    %112 = math.tanh %111 : vector<8x32xf32>
    %113 = arith.mulf %106, %112 : vector<8x32xf32>
    %c32 = arith.constant 32 : index
    %c0_24 = arith.constant 0 : index
    %114 = vector.load %arg14[%c32, %c0_24] : memref<64x32xf32, #tpu.memory_space<vmem>>, vector<8x32xf32>
    tpu.vector_store %arg14[%c32, %c0_24], %113 {strides = array<i32>} : memref<64x32xf32, #tpu.memory_space<vmem>>, vector<8x32xf32>,
    %115 = vector.extract_strided_slice %7 {offsets = [40, 0], sizes = [8, 128], strides = [1, 1]} : vector<64x128xf32> to vector<8x128xf32>
    %116 = arith.truncf %113 : vector<8x32xf32> to vector<8x32xbf16>
    %cst_25 = arith.constant dense<0.000000e+00> : vector<8x128xf32>
    %117 = tpu.matmul %116, %2, %cst_25 {dimension_numbers = #tpu.dot_dimension_numbers<[1], [0], [0], [1], [0, 0, 1, 1], [], []>} : vector<8x32xbf16>, vector<32x128xbf16>, vector<8x128xf32> -> vector<8x128xf32>
    %118 = arith.addf %115, %117 : vector<8x128xf32>
    %119 = vector.extract_strided_slice %118 {offsets = [0, 0], sizes = [8, 96], strides = [1, 1]} : vector<8x128xf32> to vector<8x96xf32>
    %120 = arith.negf %119 : vector<8x96xf32>
    %121 = math.exp %120 : vector<8x96xf32>
    %cst_26 = arith.constant 1.000000e+00 : f32
    %122 = vector.broadcast %cst_26 : f32 to vector<8x96xf32>
    %123 = arith.addf %122, %121 : vector<8x96xf32>
    %124 = arith.divf %122, %123 : vector<8x96xf32>
    %125 = vector.extract_strided_slice %124 {offsets = [0, 0], sizes = [8, 32], strides = [1, 1]} : vector<8x96xf32> to vector<8x32xf32>
    %126 = vector.extract_strided_slice %124 {offsets = [0, 32], sizes = [8, 32], strides = [1, 1]} : vector<8x96xf32> to vector<8x32xf32>
    %127 = vector.extract_strided_slice %124 {offsets = [0, 64], sizes = [8, 32], strides = [1, 1]} : vector<8x96xf32> to vector<8x32xf32>
    %128 = vector.extract_strided_slice %118 {offsets = [0, 96], sizes = [8, 32], strides = [1, 1]} : vector<8x128xf32> to vector<8x32xf32>
    %129 = math.tanh %128 : vector<8x32xf32>
    %130 = arith.mulf %126, %111 : vector<8x32xf32>
    %131 = arith.mulf %125, %129 : vector<8x32xf32>
    %132 = arith.addf %130, %131 : vector<8x32xf32>
    %133 = math.tanh %132 : vector<8x32xf32>
    %134 = arith.mulf %127, %133 : vector<8x32xf32>
    %c40 = arith.constant 40 : index
    %c0_27 = arith.constant 0 : index
    %135 = vector.load %arg14[%c40, %c0_27] : memref<64x32xf32, #tpu.memory_space<vmem>>, vector<8x32xf32>
    tpu.vector_store %arg14[%c40, %c0_27], %134 {strides = array<i32>} : memref<64x32xf32, #tpu.memory_space<vmem>>, vector<8x32xf32>,
    %136 = vector.extract_strided_slice %7 {offsets = [48, 0], sizes = [8, 128], strides = [1, 1]} : vector<64x128xf32> to vector<8x128xf32>
    %137 = arith.truncf %134 : vector<8x32xf32> to vector<8x32xbf16>
    %cst_28 = arith.constant dense<0.000000e+00> : vector<8x128xf32>
    %138 = tpu.matmul %137, %2, %cst_28 {dimension_numbers = #tpu.dot_dimension_numbers<[1], [0], [0], [1], [0, 0, 1, 1], [], []>} : vector<8x32xbf16>, vector<32x128xbf16>, vector<8x128xf32> -> vector<8x128xf32>
    %139 = arith.addf %136, %138 : vector<8x128xf32>
    %140 = vector.extract_strided_slice %139 {offsets = [0, 0], sizes = [8, 96], strides = [1, 1]} : vector<8x128xf32> to vector<8x96xf32>
    %141 = arith.negf %140 : vector<8x96xf32>
    %142 = math.exp %141 : vector<8x96xf32>
    %cst_29 = arith.constant 1.000000e+00 : f32
    %143 = vector.broadcast %cst_29 : f32 to vector<8x96xf32>
    %144 = arith.addf %143, %142 : vector<8x96xf32>
    %145 = arith.divf %143, %144 : vector<8x96xf32>
    %146 = vector.extract_strided_slice %145 {offsets = [0, 0], sizes = [8, 32], strides = [1, 1]} : vector<8x96xf32> to vector<8x32xf32>
    %147 = vector.extract_strided_slice %145 {offsets = [0, 32], sizes = [8, 32], strides = [1, 1]} : vector<8x96xf32> to vector<8x32xf32>
    %148 = vector.extract_strided_slice %145 {offsets = [0, 64], sizes = [8, 32], strides = [1, 1]} : vector<8x96xf32> to vector<8x32xf32>
    %149 = vector.extract_strided_slice %139 {offsets = [0, 96], sizes = [8, 32], strides = [1, 1]} : vector<8x128xf32> to vector<8x32xf32>
    %150 = math.tanh %149 : vector<8x32xf32>
    %151 = arith.mulf %147, %132 : vector<8x32xf32>
    %152 = arith.mulf %146, %150 : vector<8x32xf32>
    %153 = arith.addf %151, %152 : vector<8x32xf32>
    %154 = math.tanh %153 : vector<8x32xf32>
    %155 = arith.mulf %148, %154 : vector<8x32xf32>
    %c48 = arith.constant 48 : index
    %c0_30 = arith.constant 0 : index
    %156 = vector.load %arg14[%c48, %c0_30] : memref<64x32xf32, #tpu.memory_space<vmem>>, vector<8x32xf32>
    tpu.vector_store %arg14[%c48, %c0_30], %155 {strides = array<i32>} : memref<64x32xf32, #tpu.memory_space<vmem>>, vector<8x32xf32>,
    %157 = vector.extract_strided_slice %7 {offsets = [56, 0], sizes = [8, 128], strides = [1, 1]} : vector<64x128xf32> to vector<8x128xf32>
    %158 = arith.truncf %155 : vector<8x32xf32> to vector<8x32xbf16>
    %cst_31 = arith.constant dense<0.000000e+00> : vector<8x128xf32>
    %159 = tpu.matmul %158, %2, %cst_31 {dimension_numbers = #tpu.dot_dimension_numbers<[1], [0], [0], [1], [0, 0, 1, 1], [], []>} : vector<8x32xbf16>, vector<32x128xbf16>, vector<8x128xf32> -> vector<8x128xf32>
    %160 = arith.addf %157, %159 : vector<8x128xf32>
    %161 = vector.extract_strided_slice %160 {offsets = [0, 0], sizes = [8, 96], strides = [1, 1]} : vector<8x128xf32> to vector<8x96xf32>
    %162 = arith.negf %161 : vector<8x96xf32>
    %163 = math.exp %162 : vector<8x96xf32>
    %cst_32 = arith.constant 1.000000e+00 : f32
    %164 = vector.broadcast %cst_32 : f32 to vector<8x96xf32>
    %165 = arith.addf %164, %163 : vector<8x96xf32>
    %166 = arith.divf %164, %165 : vector<8x96xf32>
    %167 = vector.extract_strided_slice %166 {offsets = [0, 0], sizes = [8, 32], strides = [1, 1]} : vector<8x96xf32> to vector<8x32xf32>
    %168 = vector.extract_strided_slice %166 {offsets = [0, 32], sizes = [8, 32], strides = [1, 1]} : vector<8x96xf32> to vector<8x32xf32>
    %169 = vector.extract_strided_slice %166 {offsets = [0, 64], sizes = [8, 32], strides = [1, 1]} : vector<8x96xf32> to vector<8x32xf32>
    %170 = vector.extract_strided_slice %160 {offsets = [0, 96], sizes = [8, 32], strides = [1, 1]} : vector<8x128xf32> to vector<8x32xf32>
    %171 = math.tanh %170 : vector<8x32xf32>
    %172 = arith.mulf %168, %153 : vector<8x32xf32>
    %173 = arith.mulf %167, %171 : vector<8x32xf32>
    %174 = arith.addf %172, %173 : vector<8x32xf32>
    %175 = math.tanh %174 : vector<8x32xf32>
    %176 = arith.mulf %169, %175 : vector<8x32xf32>
    %c56 = arith.constant 56 : index
    %c0_33 = arith.constant 0 : index
    %177 = vector.load %arg14[%c56, %c0_33] : memref<64x32xf32, #tpu.memory_space<vmem>>, vector<8x32xf32>
    tpu.vector_store %arg14[%c56, %c0_33], %176 {strides = array<i32>} : memref<64x32xf32, #tpu.memory_space<vmem>>, vector<8x32xf32>,
    %c0_34 = arith.constant 0 : index
    %c0_35 = arith.constant 0 : index
    %178 = vector.load %arg14[%c0_34, %c0_35] : memref<64x32xf32, #tpu.memory_space<vmem>>, vector<64x32xf32>
    %c0_36 = arith.constant 0 : index
    %c0_37 = arith.constant 0 : index
    %179 = vector.load %arg4[%c0_36, %c0_37] : memref<32x128xbf16, #tpu.memory_space<vmem>>, vector<32x128xbf16>
    %c0_38 = arith.constant 0 : index
    %c0_39 = arith.constant 0 : index
    %180 = vector.load %arg5[%c0_38, %c0_39] : memref<32x128xbf16, #tpu.memory_space<vmem>>, vector<32x128xbf16>
    %c0_40 = arith.constant 0 : index
    %c0_41 = arith.constant 0 : index
    %181 = vector.load %arg6[%c0_40, %c0_41] : memref<1x128xf32, #tpu.memory_space<vmem>>, vector<1x128xf32>
    %182 = arith.truncf %178 : vector<64x32xf32> to vector<64x32xbf16>
    %cst_42 = arith.constant dense<0.000000e+00> : vector<64x128xf32>
    %183 = tpu.matmul %182, %179, %cst_42 {dimension_numbers = #tpu.dot_dimension_numbers<[1], [0], [0], [1], [0, 0, 1, 1], [], []>} : vector<64x32xbf16>, vector<32x128xbf16>, vector<64x128xf32> -> vector<64x128xf32>
    %184 = vector.broadcast %181 : vector<1x128xf32> to vector<64x128xf32>
    %185 = arith.addf %183, %184 : vector<64x128xf32>
    %cst_43 = arith.constant 0.000000e+00 : f32
    %186 = vector.broadcast %cst_43 : f32 to vector<16x32xf32>
    %cst_44 = arith.constant 0.000000e+00 : f32
    %187 = vector.broadcast %cst_44 : f32 to vector<16x32xf32>
    %188 = vector.extract_strided_slice %185 {offsets = [0, 0], sizes = [16, 128], strides = [1, 1]} : vector<64x128xf32> to vector<16x128xf32>
    %189 = arith.truncf %186 : vector<16x32xf32> to vector<16x32xbf16>
    %cst_45 = arith.constant dense<0.000000e+00> : vector<16x128xf32>
    %190 = tpu.matmul %189, %180, %cst_45 {dimension_numbers = #tpu.dot_dimension_numbers<[1], [0], [0], [1], [0, 0, 1, 1], [], []>} : vector<16x32xbf16>, vector<32x128xbf16>, vector<16x128xf32> -> vector<16x128xf32>
    %191 = arith.addf %188, %190 : vector<16x128xf32>
    %192 = vector.extract_strided_slice %191 {offsets = [0, 0], sizes = [16, 96], strides = [1, 1]} : vector<16x128xf32> to vector<16x96xf32>
    %193 = arith.negf %192 : vector<16x96xf32>
    %194 = math.exp %193 : vector<16x96xf32>
    %cst_46 = arith.constant 1.000000e+00 : f32
    %195 = vector.broadcast %cst_46 : f32 to vector<16x96xf32>
    %196 = arith.addf %195, %194 : vector<16x96xf32>
    %197 = arith.divf %195, %196 : vector<16x96xf32>
    %198 = vector.extract_strided_slice %197 {offsets = [0, 0], sizes = [16, 32], strides = [1, 1]} : vector<16x96xf32> to vector<16x32xf32>
    %199 = vector.extract_strided_slice %197 {offsets = [0, 32], sizes = [16, 32], strides = [1, 1]} : vector<16x96xf32> to vector<16x32xf32>
    %200 = vector.extract_strided_slice %197 {offsets = [0, 64], sizes = [16, 32], strides = [1, 1]} : vector<16x96xf32> to vector<16x32xf32>
    %201 = vector.extract_strided_slice %191 {offsets = [0, 96], sizes = [16, 32], strides = [1, 1]} : vector<16x128xf32> to vector<16x32xf32>
    %202 = math.tanh %201 : vector<16x32xf32>
    %203 = arith.mulf %199, %187 : vector<16x32xf32>
    %204 = arith.mulf %198, %202 : vector<16x32xf32>
    %205 = arith.addf %203, %204 : vector<16x32xf32>
    %206 = math.tanh %205 : vector<16x32xf32>
    %207 = arith.mulf %200, %206 : vector<16x32xf32>
    %c0_47 = arith.constant 0 : index
    %c0_48 = arith.constant 0 : index
    %208 = vector.load %arg14[%c0_47, %c0_48] : memref<64x32xf32, #tpu.memory_space<vmem>>, vector<16x32xf32>
    tpu.vector_store %arg14[%c0_47, %c0_48], %207 {strides = array<i32>} : memref<64x32xf32, #tpu.memory_space<vmem>>, vector<16x32xf32>,
    %209 = vector.extract_strided_slice %185 {offsets = [16, 0], sizes = [16, 128], strides = [1, 1]} : vector<64x128xf32> to vector<16x128xf32>
    %210 = arith.truncf %207 : vector<16x32xf32> to vector<16x32xbf16>
    %cst_49 = arith.constant dense<0.000000e+00> : vector<16x128xf32>
    %211 = tpu.matmul %210, %180, %cst_49 {dimension_numbers = #tpu.dot_dimension_numbers<[1], [0], [0], [1], [0, 0, 1, 1], [], []>} : vector<16x32xbf16>, vector<32x128xbf16>, vector<16x128xf32> -> vector<16x128xf32>
    %212 = arith.addf %209, %211 : vector<16x128xf32>
    %213 = vector.extract_strided_slice %212 {offsets = [0, 0], sizes = [16, 96], strides = [1, 1]} : vector<16x128xf32> to vector<16x96xf32>
    %214 = arith.negf %213 : vector<16x96xf32>
    %215 = math.exp %214 : vector<16x96xf32>
    %cst_50 = arith.constant 1.000000e+00 : f32
    %216 = vector.broadcast %cst_50 : f32 to vector<16x96xf32>
    %217 = arith.addf %216, %215 : vector<16x96xf32>
    %218 = arith.divf %216, %217 : vector<16x96xf32>
    %219 = vector.extract_strided_slice %218 {offsets = [0, 0], sizes = [16, 32], strides = [1, 1]} : vector<16x96xf32> to vector<16x32xf32>
    %220 = vector.extract_strided_slice %218 {offsets = [0, 32], sizes = [16, 32], strides = [1, 1]} : vector<16x96xf32> to vector<16x32xf32>
    %221 = vector.extract_strided_slice %218 {offsets = [0, 64], sizes = [16, 32], strides = [1, 1]} : vector<16x96xf32> to vector<16x32xf32>
    %222 = vector.extract_strided_slice %212 {offsets = [0, 96], sizes = [16, 32], strides = [1, 1]} : vector<16x128xf32> to vector<16x32xf32>
    %223 = math.tanh %222 : vector<16x32xf32>
    %224 = arith.mulf %220, %205 : vector<16x32xf32>
    %225 = arith.mulf %219, %223 : vector<16x32xf32>
    %226 = arith.addf %224, %225 : vector<16x32xf32>
    %227 = math.tanh %226 : vector<16x32xf32>
    %228 = arith.mulf %221, %227 : vector<16x32xf32>
    %c16_51 = arith.constant 16 : index
    %c0_52 = arith.constant 0 : index
    %229 = vector.load %arg14[%c16_51, %c0_52] : memref<64x32xf32, #tpu.memory_space<vmem>>, vector<16x32xf32>
    tpu.vector_store %arg14[%c16_51, %c0_52], %228 {strides = array<i32>} : memref<64x32xf32, #tpu.memory_space<vmem>>, vector<16x32xf32>,
    %230 = vector.extract_strided_slice %185 {offsets = [32, 0], sizes = [16, 128], strides = [1, 1]} : vector<64x128xf32> to vector<16x128xf32>
    %231 = arith.truncf %228 : vector<16x32xf32> to vector<16x32xbf16>
    %cst_53 = arith.constant dense<0.000000e+00> : vector<16x128xf32>
    %232 = tpu.matmul %231, %180, %cst_53 {dimension_numbers = #tpu.dot_dimension_numbers<[1], [0], [0], [1], [0, 0, 1, 1], [], []>} : vector<16x32xbf16>, vector<32x128xbf16>, vector<16x128xf32> -> vector<16x128xf32>
    %233 = arith.addf %230, %232 : vector<16x128xf32>
    %234 = vector.extract_strided_slice %233 {offsets = [0, 0], sizes = [16, 96], strides = [1, 1]} : vector<16x128xf32> to vector<16x96xf32>
    %235 = arith.negf %234 : vector<16x96xf32>
    %236 = math.exp %235 : vector<16x96xf32>
    %cst_54 = arith.constant 1.000000e+00 : f32
    %237 = vector.broadcast %cst_54 : f32 to vector<16x96xf32>
    %238 = arith.addf %237, %236 : vector<16x96xf32>
    %239 = arith.divf %237, %238 : vector<16x96xf32>
    %240 = vector.extract_strided_slice %239 {offsets = [0, 0], sizes = [16, 32], strides = [1, 1]} : vector<16x96xf32> to vector<16x32xf32>
    %241 = vector.extract_strided_slice %239 {offsets = [0, 32], sizes = [16, 32], strides = [1, 1]} : vector<16x96xf32> to vector<16x32xf32>
    %242 = vector.extract_strided_slice %239 {offsets = [0, 64], sizes = [16, 32], strides = [1, 1]} : vector<16x96xf32> to vector<16x32xf32>
    %243 = vector.extract_strided_slice %233 {offsets = [0, 96], sizes = [16, 32], strides = [1, 1]} : vector<16x128xf32> to vector<16x32xf32>
    %244 = math.tanh %243 : vector<16x32xf32>
    %245 = arith.mulf %241, %226 : vector<16x32xf32>
    %246 = arith.mulf %240, %244 : vector<16x32xf32>
    %247 = arith.addf %245, %246 : vector<16x32xf32>
    %248 = math.tanh %247 : vector<16x32xf32>
    %249 = arith.mulf %242, %248 : vector<16x32xf32>
    %c32_55 = arith.constant 32 : index
    %c0_56 = arith.constant 0 : index
    %250 = vector.load %arg14[%c32_55, %c0_56] : memref<64x32xf32, #tpu.memory_space<vmem>>, vector<16x32xf32>
    tpu.vector_store %arg14[%c32_55, %c0_56], %249 {strides = array<i32>} : memref<64x32xf32, #tpu.memory_space<vmem>>, vector<16x32xf32>,
    %251 = vector.extract_strided_slice %185 {offsets = [48, 0], sizes = [16, 128], strides = [1, 1]} : vector<64x128xf32> to vector<16x128xf32>
    %252 = arith.truncf %249 : vector<16x32xf32> to vector<16x32xbf16>
    %cst_57 = arith.constant dense<0.000000e+00> : vector<16x128xf32>
    %253 = tpu.matmul %252, %180, %cst_57 {dimension_numbers = #tpu.dot_dimension_numbers<[1], [0], [0], [1], [0, 0, 1, 1], [], []>} : vector<16x32xbf16>, vector<32x128xbf16>, vector<16x128xf32> -> vector<16x128xf32>
    %254 = arith.addf %251, %253 : vector<16x128xf32>
    %255 = vector.extract_strided_slice %254 {offsets = [0, 0], sizes = [16, 96], strides = [1, 1]} : vector<16x128xf32> to vector<16x96xf32>
    %256 = arith.negf %255 : vector<16x96xf32>
    %257 = math.exp %256 : vector<16x96xf32>
    %cst_58 = arith.constant 1.000000e+00 : f32
    %258 = vector.broadcast %cst_58 : f32 to vector<16x96xf32>
    %259 = arith.addf %258, %257 : vector<16x96xf32>
    %260 = arith.divf %258, %259 : vector<16x96xf32>
    %261 = vector.extract_strided_slice %260 {offsets = [0, 0], sizes = [16, 32], strides = [1, 1]} : vector<16x96xf32> to vector<16x32xf32>
    %262 = vector.extract_strided_slice %260 {offsets = [0, 32], sizes = [16, 32], strides = [1, 1]} : vector<16x96xf32> to vector<16x32xf32>
    %263 = vector.extract_strided_slice %260 {offsets = [0, 64], sizes = [16, 32], strides = [1, 1]} : vector<16x96xf32> to vector<16x32xf32>
    %264 = vector.extract_strided_slice %254 {offsets = [0, 96], sizes = [16, 32], strides = [1, 1]} : vector<16x128xf32> to vector<16x32xf32>
    %265 = math.tanh %264 : vector<16x32xf32>
    %266 = arith.mulf %262, %247 : vector<16x32xf32>
    %267 = arith.mulf %261, %265 : vector<16x32xf32>
    %268 = arith.addf %266, %267 : vector<16x32xf32>
    %269 = math.tanh %268 : vector<16x32xf32>
    %270 = arith.mulf %263, %269 : vector<16x32xf32>
    %c48_59 = arith.constant 48 : index
    %c0_60 = arith.constant 0 : index
    %271 = vector.load %arg14[%c48_59, %c0_60] : memref<64x32xf32, #tpu.memory_space<vmem>>, vector<16x32xf32>
    tpu.vector_store %arg14[%c48_59, %c0_60], %270 {strides = array<i32>} : memref<64x32xf32, #tpu.memory_space<vmem>>, vector<16x32xf32>,
    %c0_61 = arith.constant 0 : index
    %c0_62 = arith.constant 0 : index
    %272 = vector.load %arg14[%c0_61, %c0_62] : memref<64x32xf32, #tpu.memory_space<vmem>>, vector<64x32xf32>
    %c0_63 = arith.constant 0 : index
    %c0_64 = arith.constant 0 : index
    %273 = vector.load %arg7[%c0_63, %c0_64] : memref<32x128xbf16, #tpu.memory_space<vmem>>, vector<32x128xbf16>
    %c0_65 = arith.constant 0 : index
    %c0_66 = arith.constant 0 : index
    %274 = vector.load %arg8[%c0_65, %c0_66] : memref<32x128xbf16, #tpu.memory_space<vmem>>, vector<32x128xbf16>
    %c0_67 = arith.constant 0 : index
    %c0_68 = arith.constant 0 : index
    %275 = vector.load %arg9[%c0_67, %c0_68] : memref<1x128xf32, #tpu.memory_space<vmem>>, vector<1x128xf32>
    %276 = arith.truncf %272 : vector<64x32xf32> to vector<64x32xbf16>
    %cst_69 = arith.constant dense<0.000000e+00> : vector<64x128xf32>
    %277 = tpu.matmul %276, %273, %cst_69 {dimension_numbers = #tpu.dot_dimension_numbers<[1], [0], [0], [1], [0, 0, 1, 1], [], []>} : vector<64x32xbf16>, vector<32x128xbf16>, vector<64x128xf32> -> vector<64x128xf32>
    %278 = vector.broadcast %275 : vector<1x128xf32> to vector<64x128xf32>
    %279 = arith.addf %277, %278 : vector<64x128xf32>
    %cst_70 = arith.constant 0.000000e+00 : f32
    %280 = vector.broadcast %cst_70 : f32 to vector<16x32xf32>
    %cst_71 = arith.constant 0.000000e+00 : f32
    %281 = vector.broadcast %cst_71 : f32 to vector<16x32xf32>
    %282 = vector.extract_strided_slice %279 {offsets = [0, 0], sizes = [16, 128], strides = [1, 1]} : vector<64x128xf32> to vector<16x128xf32>
    %283 = arith.truncf %280 : vector<16x32xf32> to vector<16x32xbf16>
    %cst_72 = arith.constant dense<0.000000e+00> : vector<16x128xf32>
    %284 = tpu.matmul %283, %274, %cst_72 {dimension_numbers = #tpu.dot_dimension_numbers<[1], [0], [0], [1], [0, 0, 1, 1], [], []>} : vector<16x32xbf16>, vector<32x128xbf16>, vector<16x128xf32> -> vector<16x128xf32>
    %285 = arith.addf %282, %284 : vector<16x128xf32>
    %286 = vector.extract_strided_slice %285 {offsets = [0, 0], sizes = [16, 96], strides = [1, 1]} : vector<16x128xf32> to vector<16x96xf32>
    %287 = arith.negf %286 : vector<16x96xf32>
    %288 = math.exp %287 : vector<16x96xf32>
    %cst_73 = arith.constant 1.000000e+00 : f32
    %289 = vector.broadcast %cst_73 : f32 to vector<16x96xf32>
    %290 = arith.addf %289, %288 : vector<16x96xf32>
    %291 = arith.divf %289, %290 : vector<16x96xf32>
    %292 = vector.extract_strided_slice %291 {offsets = [0, 0], sizes = [16, 32], strides = [1, 1]} : vector<16x96xf32> to vector<16x32xf32>
    %293 = vector.extract_strided_slice %291 {offsets = [0, 32], sizes = [16, 32], strides = [1, 1]} : vector<16x96xf32> to vector<16x32xf32>
    %294 = vector.extract_strided_slice %291 {offsets = [0, 64], sizes = [16, 32], strides = [1, 1]} : vector<16x96xf32> to vector<16x32xf32>
    %295 = vector.extract_strided_slice %285 {offsets = [0, 96], sizes = [16, 32], strides = [1, 1]} : vector<16x128xf32> to vector<16x32xf32>
    %296 = math.tanh %295 : vector<16x32xf32>
    %297 = arith.mulf %293, %281 : vector<16x32xf32>
    %298 = arith.mulf %292, %296 : vector<16x32xf32>
    %299 = arith.addf %297, %298 : vector<16x32xf32>
    %300 = math.tanh %299 : vector<16x32xf32>
    %301 = arith.mulf %294, %300 : vector<16x32xf32>
    %c0_74 = arith.constant 0 : index
    %c0_75 = arith.constant 0 : index
    %302 = vector.load %arg14[%c0_74, %c0_75] : memref<64x32xf32, #tpu.memory_space<vmem>>, vector<16x32xf32>
    tpu.vector_store %arg14[%c0_74, %c0_75], %301 {strides = array<i32>} : memref<64x32xf32, #tpu.memory_space<vmem>>, vector<16x32xf32>,
    %303 = vector.extract_strided_slice %279 {offsets = [16, 0], sizes = [16, 128], strides = [1, 1]} : vector<64x128xf32> to vector<16x128xf32>
    %304 = arith.truncf %301 : vector<16x32xf32> to vector<16x32xbf16>
    %cst_76 = arith.constant dense<0.000000e+00> : vector<16x128xf32>
    %305 = tpu.matmul %304, %274, %cst_76 {dimension_numbers = #tpu.dot_dimension_numbers<[1], [0], [0], [1], [0, 0, 1, 1], [], []>} : vector<16x32xbf16>, vector<32x128xbf16>, vector<16x128xf32> -> vector<16x128xf32>
    %306 = arith.addf %303, %305 : vector<16x128xf32>
    %307 = vector.extract_strided_slice %306 {offsets = [0, 0], sizes = [16, 96], strides = [1, 1]} : vector<16x128xf32> to vector<16x96xf32>
    %308 = arith.negf %307 : vector<16x96xf32>
    %309 = math.exp %308 : vector<16x96xf32>
    %cst_77 = arith.constant 1.000000e+00 : f32
    %310 = vector.broadcast %cst_77 : f32 to vector<16x96xf32>
    %311 = arith.addf %310, %309 : vector<16x96xf32>
    %312 = arith.divf %310, %311 : vector<16x96xf32>
    %313 = vector.extract_strided_slice %312 {offsets = [0, 0], sizes = [16, 32], strides = [1, 1]} : vector<16x96xf32> to vector<16x32xf32>
    %314 = vector.extract_strided_slice %312 {offsets = [0, 32], sizes = [16, 32], strides = [1, 1]} : vector<16x96xf32> to vector<16x32xf32>
    %315 = vector.extract_strided_slice %312 {offsets = [0, 64], sizes = [16, 32], strides = [1, 1]} : vector<16x96xf32> to vector<16x32xf32>
    %316 = vector.extract_strided_slice %306 {offsets = [0, 96], sizes = [16, 32], strides = [1, 1]} : vector<16x128xf32> to vector<16x32xf32>
    %317 = math.tanh %316 : vector<16x32xf32>
    %318 = arith.mulf %314, %299 : vector<16x32xf32>
    %319 = arith.mulf %313, %317 : vector<16x32xf32>
    %320 = arith.addf %318, %319 : vector<16x32xf32>
    %321 = math.tanh %320 : vector<16x32xf32>
    %322 = arith.mulf %315, %321 : vector<16x32xf32>
    %c16_78 = arith.constant 16 : index
    %c0_79 = arith.constant 0 : index
    %323 = vector.load %arg14[%c16_78, %c0_79] : memref<64x32xf32, #tpu.memory_space<vmem>>, vector<16x32xf32>
    tpu.vector_store %arg14[%c16_78, %c0_79], %322 {strides = array<i32>} : memref<64x32xf32, #tpu.memory_space<vmem>>, vector<16x32xf32>,
    %324 = vector.extract_strided_slice %279 {offsets = [32, 0], sizes = [16, 128], strides = [1, 1]} : vector<64x128xf32> to vector<16x128xf32>
    %325 = arith.truncf %322 : vector<16x32xf32> to vector<16x32xbf16>
    %cst_80 = arith.constant dense<0.000000e+00> : vector<16x128xf32>
    %326 = tpu.matmul %325, %274, %cst_80 {dimension_numbers = #tpu.dot_dimension_numbers<[1], [0], [0], [1], [0, 0, 1, 1], [], []>} : vector<16x32xbf16>, vector<32x128xbf16>, vector<16x128xf32> -> vector<16x128xf32>
    %327 = arith.addf %324, %326 : vector<16x128xf32>
    %328 = vector.extract_strided_slice %327 {offsets = [0, 0], sizes = [16, 96], strides = [1, 1]} : vector<16x128xf32> to vector<16x96xf32>
    %329 = arith.negf %328 : vector<16x96xf32>
    %330 = math.exp %329 : vector<16x96xf32>
    %cst_81 = arith.constant 1.000000e+00 : f32
    %331 = vector.broadcast %cst_81 : f32 to vector<16x96xf32>
    %332 = arith.addf %331, %330 : vector<16x96xf32>
    %333 = arith.divf %331, %332 : vector<16x96xf32>
    %334 = vector.extract_strided_slice %333 {offsets = [0, 0], sizes = [16, 32], strides = [1, 1]} : vector<16x96xf32> to vector<16x32xf32>
    %335 = vector.extract_strided_slice %333 {offsets = [0, 32], sizes = [16, 32], strides = [1, 1]} : vector<16x96xf32> to vector<16x32xf32>
    %336 = vector.extract_strided_slice %333 {offsets = [0, 64], sizes = [16, 32], strides = [1, 1]} : vector<16x96xf32> to vector<16x32xf32>
    %337 = vector.extract_strided_slice %327 {offsets = [0, 96], sizes = [16, 32], strides = [1, 1]} : vector<16x128xf32> to vector<16x32xf32>
    %338 = math.tanh %337 : vector<16x32xf32>
    %339 = arith.mulf %335, %320 : vector<16x32xf32>
    %340 = arith.mulf %334, %338 : vector<16x32xf32>
    %341 = arith.addf %339, %340 : vector<16x32xf32>
    %342 = math.tanh %341 : vector<16x32xf32>
    %343 = arith.mulf %336, %342 : vector<16x32xf32>
    %c32_82 = arith.constant 32 : index
    %c0_83 = arith.constant 0 : index
    %344 = vector.load %arg14[%c32_82, %c0_83] : memref<64x32xf32, #tpu.memory_space<vmem>>, vector<16x32xf32>
    tpu.vector_store %arg14[%c32_82, %c0_83], %343 {strides = array<i32>} : memref<64x32xf32, #tpu.memory_space<vmem>>, vector<16x32xf32>,
    %345 = vector.extract_strided_slice %279 {offsets = [48, 0], sizes = [16, 128], strides = [1, 1]} : vector<64x128xf32> to vector<16x128xf32>
    %346 = arith.truncf %343 : vector<16x32xf32> to vector<16x32xbf16>
    %cst_84 = arith.constant dense<0.000000e+00> : vector<16x128xf32>
    %347 = tpu.matmul %346, %274, %cst_84 {dimension_numbers = #tpu.dot_dimension_numbers<[1], [0], [0], [1], [0, 0, 1, 1], [], []>} : vector<16x32xbf16>, vector<32x128xbf16>, vector<16x128xf32> -> vector<16x128xf32>
    %348 = arith.addf %345, %347 : vector<16x128xf32>
    %349 = vector.extract_strided_slice %348 {offsets = [0, 0], sizes = [16, 96], strides = [1, 1]} : vector<16x128xf32> to vector<16x96xf32>
    %350 = arith.negf %349 : vector<16x96xf32>
    %351 = math.exp %350 : vector<16x96xf32>
    %cst_85 = arith.constant 1.000000e+00 : f32
    %352 = vector.broadcast %cst_85 : f32 to vector<16x96xf32>
    %353 = arith.addf %352, %351 : vector<16x96xf32>
    %354 = arith.divf %352, %353 : vector<16x96xf32>
    %355 = vector.extract_strided_slice %354 {offsets = [0, 0], sizes = [16, 32], strides = [1, 1]} : vector<16x96xf32> to vector<16x32xf32>
    %356 = vector.extract_strided_slice %354 {offsets = [0, 32], sizes = [16, 32], strides = [1, 1]} : vector<16x96xf32> to vector<16x32xf32>
    %357 = vector.extract_strided_slice %354 {offsets = [0, 64], sizes = [16, 32], strides = [1, 1]} : vector<16x96xf32> to vector<16x32xf32>
    %358 = vector.extract_strided_slice %348 {offsets = [0, 96], sizes = [16, 32], strides = [1, 1]} : vector<16x128xf32> to vector<16x32xf32>
    %359 = math.tanh %358 : vector<16x32xf32>
    %360 = arith.mulf %356, %341 : vector<16x32xf32>
    %361 = arith.mulf %355, %359 : vector<16x32xf32>
    %362 = arith.addf %360, %361 : vector<16x32xf32>
    %363 = math.tanh %362 : vector<16x32xf32>
    %364 = arith.mulf %357, %363 : vector<16x32xf32>
    %c48_86 = arith.constant 48 : index
    %c0_87 = arith.constant 0 : index
    %365 = vector.load %arg14[%c48_86, %c0_87] : memref<64x32xf32, #tpu.memory_space<vmem>>, vector<16x32xf32>
    tpu.vector_store %arg14[%c48_86, %c0_87], %364 {strides = array<i32>} : memref<64x32xf32, #tpu.memory_space<vmem>>, vector<16x32xf32>,
    %c0_88 = arith.constant 0 : index
    %c0_89 = arith.constant 0 : index
    %366 = vector.load %arg14[%c0_88, %c0_89] : memref<64x32xf32, #tpu.memory_space<vmem>>, vector<64x32xf32>
    %c0_90 = arith.constant 0 : index
    %c0_91 = arith.constant 0 : index
    %367 = vector.load %arg10[%c0_90, %c0_91] : memref<32x128xbf16, #tpu.memory_space<vmem>>, vector<32x128xbf16>
    %c0_92 = arith.constant 0 : index
    %c0_93 = arith.constant 0 : index
    %368 = vector.load %arg11[%c0_92, %c0_93] : memref<32x128xbf16, #tpu.memory_space<vmem>>, vector<32x128xbf16>
    %c0_94 = arith.constant 0 : index
    %c0_95 = arith.constant 0 : index
    %369 = vector.load %arg12[%c0_94, %c0_95] : memref<1x128xf32, #tpu.memory_space<vmem>>, vector<1x128xf32>
    %370 = arith.truncf %366 : vector<64x32xf32> to vector<64x32xbf16>
    %cst_96 = arith.constant dense<0.000000e+00> : vector<64x128xf32>
    %371 = tpu.matmul %370, %367, %cst_96 {dimension_numbers = #tpu.dot_dimension_numbers<[1], [0], [0], [1], [0, 0, 1, 1], [], []>} : vector<64x32xbf16>, vector<32x128xbf16>, vector<64x128xf32> -> vector<64x128xf32>
    %372 = vector.broadcast %369 : vector<1x128xf32> to vector<64x128xf32>
    %373 = arith.addf %371, %372 : vector<64x128xf32>
    %cst_97 = arith.constant 0.000000e+00 : f32
    %374 = vector.broadcast %cst_97 : f32 to vector<32x32xf32>
    %cst_98 = arith.constant 0.000000e+00 : f32
    %375 = vector.broadcast %cst_98 : f32 to vector<32x32xf32>
    %376 = vector.extract_strided_slice %373 {offsets = [0, 0], sizes = [32, 128], strides = [1, 1]} : vector<64x128xf32> to vector<32x128xf32>
    %377 = arith.truncf %374 : vector<32x32xf32> to vector<32x32xbf16>
    %cst_99 = arith.constant dense<0.000000e+00> : vector<32x128xf32>
    %378 = tpu.matmul %377, %368, %cst_99 {dimension_numbers = #tpu.dot_dimension_numbers<[1], [0], [0], [1], [0, 0, 1, 1], [], []>} : vector<32x32xbf16>, vector<32x128xbf16>, vector<32x128xf32> -> vector<32x128xf32>
    %379 = arith.addf %376, %378 : vector<32x128xf32>
    %380 = vector.extract_strided_slice %379 {offsets = [0, 0], sizes = [32, 96], strides = [1, 1]} : vector<32x128xf32> to vector<32x96xf32>
    %381 = arith.negf %380 : vector<32x96xf32>
    %382 = math.exp %381 : vector<32x96xf32>
    %cst_100 = arith.constant 1.000000e+00 : f32
    %383 = vector.broadcast %cst_100 : f32 to vector<32x96xf32>
    %384 = arith.addf %383, %382 : vector<32x96xf32>
    %385 = arith.divf %383, %384 : vector<32x96xf32>
    %386 = vector.extract_strided_slice %385 {offsets = [0, 0], sizes = [32, 32], strides = [1, 1]} : vector<32x96xf32> to vector<32x32xf32>
    %387 = vector.extract_strided_slice %385 {offsets = [0, 32], sizes = [32, 32], strides = [1, 1]} : vector<32x96xf32> to vector<32x32xf32>
    %388 = vector.extract_strided_slice %385 {offsets = [0, 64], sizes = [32, 32], strides = [1, 1]} : vector<32x96xf32> to vector<32x32xf32>
    %389 = vector.extract_strided_slice %379 {offsets = [0, 96], sizes = [32, 32], strides = [1, 1]} : vector<32x128xf32> to vector<32x32xf32>
    %390 = math.tanh %389 : vector<32x32xf32>
    %391 = arith.mulf %387, %375 : vector<32x32xf32>
    %392 = arith.mulf %386, %390 : vector<32x32xf32>
    %393 = arith.addf %391, %392 : vector<32x32xf32>
    %394 = math.tanh %393 : vector<32x32xf32>
    %395 = arith.mulf %388, %394 : vector<32x32xf32>
    %c0_101 = arith.constant 0 : index
    %c0_102 = arith.constant 0 : index
    %396 = vector.load %arg14[%c0_101, %c0_102] : memref<64x32xf32, #tpu.memory_space<vmem>>, vector<32x32xf32>
    tpu.vector_store %arg14[%c0_101, %c0_102], %395 {strides = array<i32>} : memref<64x32xf32, #tpu.memory_space<vmem>>, vector<32x32xf32>,
    %397 = vector.extract_strided_slice %373 {offsets = [32, 0], sizes = [32, 128], strides = [1, 1]} : vector<64x128xf32> to vector<32x128xf32>
    %398 = arith.truncf %395 : vector<32x32xf32> to vector<32x32xbf16>
    %cst_103 = arith.constant dense<0.000000e+00> : vector<32x128xf32>
    %399 = tpu.matmul %398, %368, %cst_103 {dimension_numbers = #tpu.dot_dimension_numbers<[1], [0], [0], [1], [0, 0, 1, 1], [], []>} : vector<32x32xbf16>, vector<32x128xbf16>, vector<32x128xf32> -> vector<32x128xf32>
    %400 = arith.addf %397, %399 : vector<32x128xf32>
    %401 = vector.extract_strided_slice %400 {offsets = [0, 0], sizes = [32, 96], strides = [1, 1]} : vector<32x128xf32> to vector<32x96xf32>
    %402 = arith.negf %401 : vector<32x96xf32>
    %403 = math.exp %402 : vector<32x96xf32>
    %cst_104 = arith.constant 1.000000e+00 : f32
    %404 = vector.broadcast %cst_104 : f32 to vector<32x96xf32>
    %405 = arith.addf %404, %403 : vector<32x96xf32>
    %406 = arith.divf %404, %405 : vector<32x96xf32>
    %407 = vector.extract_strided_slice %406 {offsets = [0, 0], sizes = [32, 32], strides = [1, 1]} : vector<32x96xf32> to vector<32x32xf32>
    %408 = vector.extract_strided_slice %406 {offsets = [0, 32], sizes = [32, 32], strides = [1, 1]} : vector<32x96xf32> to vector<32x32xf32>
    %409 = vector.extract_strided_slice %406 {offsets = [0, 64], sizes = [32, 32], strides = [1, 1]} : vector<32x96xf32> to vector<32x32xf32>
    %410 = vector.extract_strided_slice %400 {offsets = [0, 96], sizes = [32, 32], strides = [1, 1]} : vector<32x128xf32> to vector<32x32xf32>
    %411 = math.tanh %410 : vector<32x32xf32>
    %412 = arith.mulf %408, %393 : vector<32x32xf32>
    %413 = arith.mulf %407, %411 : vector<32x32xf32>
    %414 = arith.addf %412, %413 : vector<32x32xf32>
    %415 = math.tanh %414 : vector<32x32xf32>
    %416 = arith.mulf %409, %415 : vector<32x32xf32>
    %c32_105 = arith.constant 32 : index
    %c0_106 = arith.constant 0 : index
    %417 = vector.load %arg14[%c32_105, %c0_106] : memref<64x32xf32, #tpu.memory_space<vmem>>, vector<32x32xf32>
    tpu.vector_store %arg14[%c32_105, %c0_106], %416 {strides = array<i32>} : memref<64x32xf32, #tpu.memory_space<vmem>>, vector<32x32xf32>,
    %c0_107 = arith.constant 0 : index
    %c0_108 = arith.constant 0 : index
    %418 = vector.load %arg14[%c0_107, %c0_108] : memref<64x32xf32, #tpu.memory_space<vmem>>, vector<64x32xf32>
    %419 = arith.addf %418, %272 : vector<64x32xf32>
    %c0_109 = arith.constant 0 : index
    %c0_110 = arith.constant 0 : index
    %420 = vector.load %arg13[%c0_109, %c0_110] : memref<64x32xf32, #tpu.memory_space<vmem>>, vector<64x32xf32>
    tpu.vector_store %arg13[%c0_109, %c0_110], %419 {strides = array<i32>} : memref<64x32xf32, #tpu.memory_space<vmem>>, vector<64x32xf32>,
    return
  }
}

</mosaic_0001>

<llo_original>
// kernel: residual_drnn_forward.1
$region0: #{residual_drnn_forward.1}
  #allocation0 [shape = 'u32[]', space=smem, size = 0x4, offset = 0x4, fixed_abs, tag = 'smem constant byte address 0x4 - core index']
  #allocation1 [shape = 'u32[144,128]{1,0:T(1,128)}', space=vmem, size = 0x12000, scoped, tag = 'internal scratch']
  #allocation2 [shape = 'f32[64,32]{1,0:T(8,128)}', space=vmem, size = 0x8000, scoped, tag = 'scratch operand']
  %s0 = inlined_call_operand.vmem [shape: f32[64,16], index: 0, kind: input, shape index: {}]
  %s1 = inlined_call_operand.vmem [shape: bf16[16,128], index: 1, kind: input, shape index: {}]
  %s2 = inlined_call_operand.vmem [shape: bf16[32,128], index: 2, kind: input, shape index: {}]
  %s3 = inlined_call_operand.vmem [shape: f32[1,128], index: 3, kind: input, shape index: {}]
  %s4 = inlined_call_operand.vmem [shape: bf16[32,128], index: 4, kind: input, shape index: {}]
  %s5 = inlined_call_operand.vmem [shape: bf16[32,128], index: 5, kind: input, shape index: {}]
  %s6 = inlined_call_operand.vmem [shape: f32[1,128], index: 6, kind: input, shape index: {}]
  %s7 = inlined_call_operand.vmem [shape: bf16[32,128], index: 7, kind: input, shape index: {}]
  %s8 = inlined_call_operand.vmem [shape: bf16[32,128], index: 8, kind: input, shape index: {}]
  %s9 = inlined_call_operand.vmem [shape: f32[1,128], index: 9, kind: input, shape index: {}]
  %s10 = inlined_call_operand.vmem [shape: bf16[32,128], index: 10, kind: input, shape index: {}]
  %s11 = inlined_call_operand.vmem [shape: bf16[32,128], index: 11, kind: input, shape index: {}]
  %s12 = inlined_call_operand.vmem [shape: f32[1,128], index: 12, kind: input, shape index: {}]
  %s13 = inlined_call_operand.vmem [shape: f32[64,32], index: 13, kind: output, shape index: {}]
  %s14 = sld [smem:[#allocation0]]
  $region62: #{residual_drnn_forward.1} parent=0
    _
  %s16 = ssub.s32 1, %s14
  %s17 = scalar_select 0, %s16, %s14
  // Predicated region
  $region2: #{residual_drnn_forward.1} parent=0 // pred_check
    _
  $region3: #{residual_drnn_forward.1} parent=0 // pred_check_branch
    %19 = sbr.rel (0) target = $region5
  $region4: #{residual_drnn_forward.1} parent=0 // pred_region
    _
  $region5: #{residual_drnn_forward.1} parent=0 // pred_fallthru
    _
  // Predicated region
  $region6: #{residual_drnn_forward.1} parent=0 // pred_check
    _
  $region7: #{residual_drnn_forward.1} parent=0 // pred_check_branch
    %21 = sbr.rel (0) target = $region9
  $region8: #{residual_drnn_forward.1} parent=0 // pred_region
    _
  $region9: #{residual_drnn_forward.1} parent=0 // pred_fallthru
    _
  // Predicated region
  $region10: #{residual_drnn_forward.1} parent=0 // pred_check
    _
  $region11: #{residual_drnn_forward.1} parent=0 // pred_check_branch
    %23 = sbr.rel (0) target = $region13
  $region12: #{residual_drnn_forward.1} parent=0 // pred_region
    _
  $region13: #{residual_drnn_forward.1} parent=0 // pred_fallthru
    _
  // Predicated region
  $region14: #{residual_drnn_forward.1} parent=0 // pred_check
    _
  $region15: #{residual_drnn_forward.1} parent=0 // pred_check_branch
    %25 = sbr.rel (0) target = $region17
  $region16: #{residual_drnn_forward.1} parent=0 // pred_region
    _
  $region17: #{residual_drnn_forward.1} parent=0 // pred_fallthru
    _
  // Predicated region
  $region18: #{residual_drnn_forward.1} parent=0 // pred_check
    _
  $region19: #{residual_drnn_forward.1} parent=0 // pred_check_branch
    %27 = sbr.rel (0) target = $region21
  $region20: #{residual_drnn_forward.1} parent=0 // pred_region
    _
  $region21: #{residual_drnn_forward.1} parent=0 // pred_fallthru
    _
  // Predicated region
  $region22: #{residual_drnn_forward.1} parent=0 // pred_check
    _
  $region23: #{residual_drnn_forward.1} parent=0 // pred_check_branch
    %29 = sbr.rel (0) target = $region25
  $region24: #{residual_drnn_forward.1} parent=0 // pred_region
    _
  $region25: #{residual_drnn_forward.1} parent=0 // pred_fallthru
    _
  // Predicated region
  $region26: #{residual_drnn_forward.1} parent=0 // pred_check
    _
  $region27: #{residual_drnn_forward.1} parent=0 // pred_check_branch
    %31 = sbr.rel (0) target = $region29
  $region28: #{residual_drnn_forward.1} parent=0 // pred_region
    _
  $region29: #{residual_drnn_forward.1} parent=0 // pred_fallthru
    _
  // Predicated region
  $region30: #{residual_drnn_forward.1} parent=0 // pred_check
    _
  $region31: #{residual_drnn_forward.1} parent=0 // pred_check_branch
    %33 = sbr.rel (0) target = $region33
  $region32: #{residual_drnn_forward.1} parent=0 // pred_region
    _
  $region33: #{residual_drnn_forward.1} parent=0 // pred_fallthru
    _
  // Predicated region
  $region34: #{residual_drnn_forward.1} parent=0 // pred_check
    _
  $region35: #{residual_drnn_forward.1} parent=0 // pred_check_branch
    %35 = sbr.rel (0) target = $region37
  $region36: #{residual_drnn_forward.1} parent=0 // pred_region
    _
  $region37: #{residual_drnn_forward.1} parent=0 // pred_fallthru
    _
  // Predicated region
  $region38: #{residual_drnn_forward.1} parent=0 // pred_check
    _
  $region39: #{residual_drnn_forward.1} parent=0 // pred_check_branch
    %37 = sbr.rel (0) target = $region41
  $region40: #{residual_drnn_forward.1} parent=0 // pred_region
    _
  $region41: #{residual_drnn_forward.1} parent=0 // pred_fallthru
    _
  // Predicated region
  $region42: #{residual_drnn_forward.1} parent=0 // pred_check
    _
  $region43: #{residual_drnn_forward.1} parent=0 // pred_check_branch
    %39 = sbr.rel (0) target = $region45
  $region44: #{residual_drnn_forward.1} parent=0 // pred_region
    _
  $region45: #{residual_drnn_forward.1} parent=0 // pred_fallthru
    _
  // Predicated region
  $region46: #{residual_drnn_forward.1} parent=0 // pred_check
    _
  $region47: #{residual_drnn_forward.1} parent=0 // pred_check_branch
    %41 = sbr.rel (0) target = $region49
  $region48: #{residual_drnn_forward.1} parent=0 // pred_region
    _
  $region49: #{residual_drnn_forward.1} parent=0 // pred_fallthru
    _
  // Predicated region
  $region50: #{residual_drnn_forward.1} parent=0 // pred_check
    _
  $region51: #{residual_drnn_forward.1} parent=0 // pred_check_branch
    %43 = sbr.rel (0) target = $region53
  $region52: #{residual_drnn_forward.1} parent=0 // pred_region
    _
  $region53: #{residual_drnn_forward.1} parent=0 // pred_fallthru
    _
  %v45 = vld [vmem:[%s0] sm:$0xff]
  %v46 = vld [vmem:[%s0 + $0x8] sm:$0xff]
  %v47 = vld [vmem:[%s0 + $0x10] sm:$0xff]
  %v48 = vld [vmem:[%s0 + $0x18] sm:$0xff]
  %v49 = vld [vmem:[%s0 + $0x20] sm:$0xff]
  %v50 = vld [vmem:[%s0 + $0x28] sm:$0xff]
  %v51 = vld [vmem:[%s0 + $0x30] sm:$0xff]
  %v52 = vld [vmem:[%s0 + $0x38] sm:$0xff]
  %v53 = vld [vmem:[%s1] sm:$0xf]
  %v54 = vld [vmem:[%s1 + $0x4] sm:$0xf]
  %v55 = vld [vmem:[%s2] sm:$0xf]
  %v56 = vld [vmem:[%s2 + $0x4] sm:$0xf]
  %v57 = vld [vmem:[%s2 + $0x8] sm:$0xf]
  %v58 = vld [vmem:[%s2 + $0xc] sm:$0xf]
  %v59 = vld [vmem:[%s3] sm:$0x1]
  %v60 = vpack.c.bf16 %v46, %v45
  %v61 = vpack.c.bf16 %v48, %v47
  %v62 = vpack.c.bf16 %v50, %v49
  %v63 = vpack.c.bf16 %v52, %v51
  %v65 = vlaneseq
  %v66 = vshrl.u32 %v65, 7
  %v67 = vsub.s32 0, %v66
  %v68 = vrot.slane %v59, %v67
  %v72 = vunpack.c.l.b16 %v53
  %v73 = vunpack.c.l.b16 %v54
  %v74 = vpack.c.b16 %v73, %v72
  %vm76 = vcmask 130048
  %v78 = vsel %vm76, %v60, 0
  %v81 = vsel %vm76, %v61, 0
  %v84 = vsel %vm76, %v62, 0
  %v87 = vsel %vm76, %v63, 0
  %89 = vmatprep.subr.bf16.mxu0 0
  %90 = vmatpush1.bf16.msra.mxu0 %v74
  %91 = vmatprep.subr.bf16.mxu0 0
  %92 = vmatpush1.bf16.msra.mxu0 0
  %93 = vmatprep.subr.bf16.mxu0 0
  %94 = vmatpush1.bf16.msra.mxu0 0
  %95 = vmatprep.subr.bf16.mxu0 0
  %96 = vmatpush1.bf16.msra.mxu0 0
  %97 = vmatprep.subr.bf16.mxu0 0
  %98 = vmatpush1.bf16.msra.mxu0 0
  %99 = vmatprep.subr.bf16.mxu0 0
  %100 = vmatpush1.bf16.msra.mxu0 0
  %101 = vmatprep.subr.bf16.mxu0 0
  %102 = vmatpush1.bf16.msra.mxu0 0
  %103 = vmatprep.subr.bf16.mxu0 0
  %104 = vmatpush1.bf16.msra.mxu0 0
  %105 = vmatprep.subr.bf16.mxu0 0
  %106 = vmatpush1.bf16.msra.mxu0 0
  %107 = vmatprep.subr.bf16.mxu0 0
  %108 = vmatpush1.bf16.msra.mxu0 0
  %109 = vmatprep.subr.bf16.mxu0 0
  %110 = vmatpush1.bf16.msra.mxu0 0
  %111 = vmatprep.subr.bf16.mxu0 0
  %112 = vmatpush1.bf16.msra.mxu0 0
  %113 = vmatprep.subr.bf16.mxu0 0
  %114 = vmatpush1.bf16.msra.mxu0 0
  %115 = vmatprep.subr.bf16.mxu0 0
  %116 = vmatpush1.bf16.msra.mxu0 0
  %117 = vmatprep.subr.bf16.mxu0 0
  %118 = vmatpush1.bf16.msra.mxu0 0
  %119 = vmatprep.subr.bf16.mxu0 0
  %120 = vmatpush1.bf16.msra.mxu0 0
  %121 = vmatprep.mubr.bf16.mxu0 0
  %122 = vmatmul.mubr.bf16.gmra.mrb[0].mxu0 %v78
  %v123 = vpop.f32.mrb[0].mxu0
  %v124 = vadd.f32 %v68, %v123
  %v125 = vpop.f32.mrb[0].mxu0
  %v126 = vpop.f32.mrb[0].mxu0
  %v127 = vadd.f32 %v68, %v126
  %v128 = vpop.f32.mrb[0].mxu0
  %129 = vmatprep.mubr.bf16.mxu0 0
  %130 = vmatmul.mubr.bf16.gmra.mrb[0].mxu0 %v81
  %v131 = vpop.f32.mrb[0].mxu0
  %v132 = vadd.f32 %v68, %v131
  %v133 = vpop.f32.mrb[0].mxu0
  %v134 = vpop.f32.mrb[0].mxu0
  %v135 = vadd.f32 %v68, %v134
  %v136 = vpop.f32.mrb[0].mxu0
  %137 = vmatprep.mubr.bf16.mxu0 0
  %138 = vmatmul.mubr.bf16.gmra.mrb[0].mxu0 %v84
  %v139 = vpop.f32.mrb[0].mxu0
  %v140 = vadd.f32 %v68, %v139
  %v141 = vpop.f32.mrb[0].mxu0
  %v142 = vpop.f32.mrb[0].mxu0
  %v143 = vadd.f32 %v68, %v142
  %v144 = vpop.f32.mrb[0].mxu0
  %145 = vmatprep.mubr.bf16.mxu0 0
  %146 = vmatmul.mubr.bf16.gmra.mrb[0].mxu0 %v87
  %v147 = vpop.f32.mrb[0].mxu0
  %v148 = vadd.f32 %v68, %v147
  %v149 = vpop.f32.mrb[0].mxu0
  %v150 = vpop.f32.mrb[0].mxu0
  %v151 = vadd.f32 %v68, %v150
  %v152 = vpop.f32.mrb[0].mxu0
  %153 = vdwg.mxu0
  %v158 = vunpack.c.l.b16 %v55
  %v159 = vunpack.c.l.b16 %v56
  %v160 = vunpack.c.l.b16 %v57
  %v161 = vunpack.c.l.b16 %v58
  %v162 = vpack.c.b16 %v159, %v158
  %v163 = vpack.c.b16 %v161, %v160
  %vm166 = vcmask 261120
  %v168 = vsel %vm166, 0, 0
  %170 = vmatprep.subr.bf16.mxu0 0
  %171 = vmatpush1.bf16.msra.mxu0 %v162
  %172 = vmatprep.subr.bf16.mxu0 0
  %173 = vmatpush1.bf16.msra.mxu0 %v163
  %174 = vmatprep.subr.bf16.mxu0 0
  %175 = vmatpush1.bf16.msra.mxu0 0
  %176 = vmatprep.subr.bf16.mxu0 0
  %177 = vmatpush1.bf16.msra.mxu0 0
  %178 = vmatprep.subr.bf16.mxu0 0
  %179 = vmatpush1.bf16.msra.mxu0 0
  %180 = vmatprep.subr.bf16.mxu0 0
  %181 = vmatpush1.bf16.msra.mxu0 0
  %182 = vmatprep.subr.bf16.mxu0 0
  %183 = vmatpush1.bf16.msra.mxu0 0
  %184 = vmatprep.subr.bf16.mxu0 0
  %185 = vmatpush1.bf16.msra.mxu0 0
  %186 = vmatprep.subr.bf16.mxu0 0
  %187 = vmatpush1.bf16.msra.mxu0 0
  %188 = vmatprep.subr.bf16.mxu0 0
  %189 = vmatpush1.bf16.msra.mxu0 0
  %190 = vmatprep.subr.bf16.mxu0 0
  %191 = vmatpush1.bf16.msra.mxu0 0
  %192 = vmatprep.subr.bf16.mxu0 0
  %193 = vmatpush1.bf16.msra.mxu0 0
  %194 = vmatprep.subr.bf16.mxu0 0
  %195 = vmatpush1.bf16.msra.mxu0 0
  %196 = vmatprep.subr.bf16.mxu0 0
  %197 = vmatpush1.bf16.msra.mxu0 0
  %198 = vmatprep.subr.bf16.mxu0 0
  %199 = vmatpush1.bf16.msra.mxu0 0
  %200 = vmatprep.subr.bf16.mxu0 0
  %201 = vmatpush1.bf16.msra.mxu0 0
  %202 = vmatprep.mubr.bf16.mxu0 0
  %203 = vmatmul.mubr.bf16.gmra.mrb[0].mxu0 %v168
  %v204 = vpop.f32.mrb[0].mxu0
  %v205 = vadd.f32 0.0, %v204
  %v206 = vpop.f32.mrb[0].mxu0
  %v207 = vpop.f32.mrb[0].mxu0
  %v208 = vpop.f32.mrb[0].mxu0
  %209 = vdwg.mxu0
  %v210 = vadd.f32 %v124, %v205
  %v211 = vxor.u32 %v210, 2147483648
  %v212 = vmul.f32 %v211, 1.442695
  %v213 = vpow.pop %v212
  %v214 = vadd.f32 %v213, 1.0
  %v215 = vrcp.pop %v214
  %v216 = vmul.f32 1.0, %v215
  %v217 = vtanh.pop %v210
  %v218 = vmul.f32 %v216, 0.0
  %220 = vrot.lane.b32.xlu0 %v217, 32
  %v221 = vpop.permute.xlu0 %220
  %v223 = vmul.f32 %v216, %v221
  %225 = vrot.lane.b32.xlu0 %v223, 32
  %v226 = vpop.permute.xlu0 %225
  %v228 = vadd.f32 %v218, %v226
  %v229 = vtanh.pop %v228
  %231 = vrot.lane.b32.xlu0 %v229, 32
  %v232 = vpop.permute.xlu0 %231
  %v234 = vmul.f32 %v216, %v232
  %236 = vrot.lane.b32.xlu0 %v234, 64
  %v237 = vpop.permute.xlu0 %236
  %239 = vst.msk [vmem:[#allocation2] sm:$0xff] %vm166, %v237
  %v240 = vpack.c.bf16 %v234, %v234
  %242 = vrot.lane.b32.xlu0 %v240, 64
  %v243 = vpop.permute.xlu0 %242
  %v245 = vsel %vm166, %v243, 0
  %247 = vmatprep.subr.bf16.mxu0 0
  %248 = vmatpush1.bf16.msra.mxu0 %v162
  %249 = vmatprep.subr.bf16.mxu0 0
  %250 = vmatpush1.bf16.msra.mxu0 %v163
  %251 = vmatprep.subr.bf16.mxu0 0
  %252 = vmatpush1.bf16.msra.mxu0 0
  %253 = vmatprep.subr.bf16.mxu0 0
  %254 = vmatpush1.bf16.msra.mxu0 0
  %255 = vmatprep.subr.bf16.mxu0 0
  %256 = vmatpush1.bf16.msra.mxu0 0
  %257 = vmatprep.subr.bf16.mxu0 0
  %258 = vmatpush1.bf16.msra.mxu0 0
  %259 = vmatprep.subr.bf16.mxu0 0
  %260 = vmatpush1.bf16.msra.mxu0 0
  %261 = vmatprep.subr.bf16.mxu0 0
  %262 = vmatpush1.bf16.msra.mxu0 0
  %263 = vmatprep.subr.bf16.mxu0 0
  %264 = vmatpush1.bf16.msra.mxu0 0
  %265 = vmatprep.subr.bf16.mxu0 0
  %266 = vmatpush1.bf16.msra.mxu0 0
  %267 = vmatprep.subr.bf16.mxu0 0
  %268 = vmatpush1.bf16.msra.mxu0 0
  %269 = vmatprep.subr.bf16.mxu0 0
  %270 = vmatpush1.bf16.msra.mxu0 0
  %271 = vmatprep.subr.bf16.mxu0 0
  %272 = vmatpush1.bf16.msra.mxu0 0
  %273 = vmatprep.subr.bf16.mxu0 0
  %274 = vmatpush1.bf16.msra.mxu0 0
  %275 = vmatprep.subr.bf16.mxu0 0
  %276 = vmatpush1.bf16.msra.mxu0 0
  %277 = vmatprep.subr.bf16.mxu0 0
  %278 = vmatpush1.bf16.msra.mxu0 0
  %279 = vmatprep.mubr.bf16.mxu0 0
  %280 = vmatmul.mubr.bf16.gmra.mrb[0].mxu0 %v245
  %v281 = vpop.f32.mrb[0].mxu0
  %v282 = vadd.f32 0.0, %v281
  %v283 = vpop.f32.mrb[0].mxu0
  %v284 = vpop.f32.mrb[0].mxu0
  %v285 = vpop.f32.mrb[0].mxu0
  %286 = vdwg.mxu0
  %v287 = vadd.f32 %v127, %v282
  %v288 = vxor.u32 %v287, 2147483648
  %v289 = vmul.f32 %v288, 1.442695
  %v290 = vpow.pop %v289
  %v291 = vadd.f32 %v290, 1.0
  %v292 = vrcp.pop %v291
  %v293 = vmul.f32 1.0, %v292
  %v294 = vtanh.pop %v287
  %v295 = vmul.f32 %v293, %v228
  %297 = vrot.lane.b32.xlu0 %v294, 32
  %v298 = vpop.permute.xlu0 %297
  %v300 = vmul.f32 %v293, %v298
  %302 = vrot.lane.b32.xlu0 %v300, 32
  %v303 = vpop.permute.xlu0 %302
  %v305 = vadd.f32 %v295, %v303
  %v306 = vtanh.pop %v305
  %308 = vrot.lane.b32.xlu0 %v306, 32
  %v309 = vpop.permute.xlu0 %308
  %v311 = vmul.f32 %v293, %v309
  %313 = vrot.lane.b32.xlu0 %v311, 64
  %v314 = vpop.permute.xlu0 %313
  %316 = vst.msk [vmem:[#allocation2 + $0x8] sm:$0xff] %vm166, %v314
  %v317 = vpack.c.bf16 %v311, %v311
  %319 = vrot.lane.b32.xlu0 %v317, 64
  %v320 = vpop.permute.xlu0 %319
  %v322 = vsel %vm166, %v320, 0
  %324 = vmatprep.subr.bf16.mxu0 0
  %325 = vmatpush1.bf16.msra.mxu0 %v162
  %326 = vmatprep.subr.bf16.mxu0 0
  %327 = vmatpush1.bf16.msra.mxu0 %v163
  %328 = vmatprep.subr.bf16.mxu0 0
  %329 = vmatpush1.bf16.msra.mxu0 0
  %330 = vmatprep.subr.bf16.mxu0 0
  %331 = vmatpush1.bf16.msra.mxu0 0
  %332 = vmatprep.subr.bf16.mxu0 0
  %333 = vmatpush1.bf16.msra.mxu0 0
  %334 = vmatprep.subr.bf16.mxu0 0
  %335 = vmatpush1.bf16.msra.mxu0 0
  %336 = vmatprep.subr.bf16.mxu0 0
  %337 = vmatpush1.bf16.msra.mxu0 0
  %338 = vmatprep.subr.bf16.mxu0 0
  %339 = vmatpush1.bf16.msra.mxu0 0
  %340 = vmatprep.subr.bf16.mxu0 0
  %341 = vmatpush1.bf16.msra.mxu0 0
  %342 = vmatprep.subr.bf16.mxu0 0
  %343 = vmatpush1.bf16.msra.mxu0 0
  %344 = vmatprep.subr.bf16.mxu0 0
  %345 = vmatpush1.bf16.msra.mxu0 0
  %346 = vmatprep.subr.bf16.mxu0 0
  %347 = vmatpush1.bf16.msra.mxu0 0
  %348 = vmatprep.subr.bf16.mxu0 0
  %349 = vmatpush1.bf16.msra.mxu0 0
  %350 = vmatprep.subr.bf16.mxu0 0
  %351 = vmatpush1.bf16.msra.mxu0 0
  %352 = vmatprep.subr.bf16.mxu0 0
  %353 = vmatpush1.bf16.msra.mxu0 0
  %354 = vmatprep.subr.bf16.mxu0 0
  %355 = vmatpush1.bf16.msra.mxu0 0
  %356 = vmatprep.mubr.bf16.mxu0 0
  %357 = vmatmul.mubr.bf16.gmra.mrb[0].mxu0 %v322
  %v358 = vpop.f32.mrb[0].mxu0
  %v359 = vadd.f32 0.0, %v358
  %v360 = vpop.f32.mrb[0].mxu0
  %v361 = vpop.f32.mrb[0].mxu0
  %v362 = vpop.f32.mrb[0].mxu0
  %363 = vdwg.mxu0
  %v364 = vadd.f32 %v132, %v359
  %v365 = vxor.u32 %v364, 2147483648
  %v366 = vmul.f32 %v365, 1.442695
  %v367 = vpow.pop %v366
  %v368 = vadd.f32 %v367, 1.0
  %v369 = vrcp.pop %v368
  %v370 = vmul.f32 1.0, %v369
  %v371 = vtanh.pop %v364
  %v372 = vmul.f32 %v370, %v305
  %374 = vrot.lane.b32.xlu0 %v371, 32
  %v375 = vpop.permute.xlu0 %374
  %v377 = vmul.f32 %v370, %v375
  %379 = vrot.lane.b32.xlu0 %v377, 32
  %v380 = vpop.permute.xlu0 %379
  %v382 = vadd.f32 %v372, %v380
  %v383 = vtanh.pop %v382
  %385 = vrot.lane.b32.xlu0 %v383, 32
  %v386 = vpop.permute.xlu0 %385
  %v388 = vmul.f32 %v370, %v386
  %390 = vrot.lane.b32.xlu0 %v388, 64
  %v391 = vpop.permute.xlu0 %390
  %393 = vst.msk [vmem:[#allocation2 + $0x10] sm:$0xff] %vm166, %v391
  %v394 = vpack.c.bf16 %v388, %v388
  %396 = vrot.lane.b32.xlu0 %v394, 64
  %v397 = vpop.permute.xlu0 %396
  %v399 = vsel %vm166, %v397, 0
  %401 = vmatprep.subr.bf16.mxu0 0
  %402 = vmatpush1.bf16.msra.mxu0 %v162
  %403 = vmatprep.subr.bf16.mxu0 0
  %404 = vmatpush1.bf16.msra.mxu0 %v163
  %405 = vmatprep.subr.bf16.mxu0 0
  %406 = vmatpush1.bf16.msra.mxu0 0
  %407 = vmatprep.subr.bf16.mxu0 0
  %408 = vmatpush1.bf16.msra.mxu0 0
  %409 = vmatprep.subr.bf16.mxu0 0
  %410 = vmatpush1.bf16.msra.mxu0 0
  %411 = vmatprep.subr.bf16.mxu0 0
  %412 = vmatpush1.bf16.msra.mxu0 0
  %413 = vmatprep.subr.bf16.mxu0 0
  %414 = vmatpush1.bf16.msra.mxu0 0
  %415 = vmatprep.subr.bf16.mxu0 0
  %416 = vmatpush1.bf16.msra.mxu0 0
  %417 = vmatprep.subr.bf16.mxu0 0
  %418 = vmatpush1.bf16.msra.mxu0 0
  %419 = vmatprep.subr.bf16.mxu0 0
  %420 = vmatpush1.bf16.msra.mxu0 0
  %421 = vmatprep.subr.bf16.mxu0 0
  %422 = vmatpush1.bf16.msra.mxu0 0
  %423 = vmatprep.subr.bf16.mxu0 0
  %424 = vmatpush1.bf16.msra.mxu0 0
  %425 = vmatprep.subr.bf16.mxu0 0
  %426 = vmatpush1.bf16.msra.mxu0 0
  %427 = vmatprep.subr.bf16.mxu0 0
  %428 = vmatpush1.bf16.msra.mxu0 0
  %429 = vmatprep.subr.bf16.mxu0 0
  %430 = vmatpush1.bf16.msra.mxu0 0
  %431 = vmatprep.subr.bf16.mxu0 0
  %432 = vmatpush1.bf16.msra.mxu0 0
  %433 = vmatprep.mubr.bf16.mxu0 0
  %434 = vmatmul.mubr.bf16.gmra.mrb[0].mxu0 %v399
  %v435 = vpop.f32.mrb[0].mxu0
  %v436 = vadd.f32 0.0, %v435
  %v437 = vpop.f32.mrb[0].mxu0
  %v438 = vpop.f32.mrb[0].mxu0
  %v439 = vpop.f32.mrb[0].mxu0
  %440 = vdwg.mxu0
  %v441 = vadd.f32 %v135, %v436
  %v442 = vxor.u32 %v441, 2147483648
  %v443 = vmul.f32 %v442, 1.442695
  %v444 = vpow.pop %v443
  %v445 = vadd.f32 %v444, 1.0
  %v446 = vrcp.pop %v445
  %v447 = vmul.f32 1.0, %v446
  %v448 = vtanh.pop %v441
  %v449 = vmul.f32 %v447, %v382
  %451 = vrot.lane.b32.xlu0 %v448, 32
  %v452 = vpop.permute.xlu0 %451
  %v454 = vmul.f32 %v447, %v452
  %456 = vrot.lane.b32.xlu0 %v454, 32
  %v457 = vpop.permute.xlu0 %456
  %v459 = vadd.f32 %v449, %v457
  %v460 = vtanh.pop %v459
  %462 = vrot.lane.b32.xlu0 %v460, 32
  %v463 = vpop.permute.xlu0 %462
  %v465 = vmul.f32 %v447, %v463
  %467 = vrot.lane.b32.xlu0 %v465, 64
  %v468 = vpop.permute.xlu0 %467
  %470 = vst.msk [vmem:[#allocation2 + $0x18] sm:$0xff] %vm166, %v468
  %v471 = vpack.c.bf16 %v465, %v465
  %473 = vrot.lane.b32.xlu0 %v471, 64
  %v474 = vpop.permute.xlu0 %473
  %v476 = vsel %vm166, %v474, 0
  %478 = vmatprep.subr.bf16.mxu0 0
  %479 = vmatpush1.bf16.msra.mxu0 %v162
  %480 = vmatprep.subr.bf16.mxu0 0
  %481 = vmatpush1.bf16.msra.mxu0 %v163
  %482 = vmatprep.subr.bf16.mxu0 0
  %483 = vmatpush1.bf16.msra.mxu0 0
  %484 = vmatprep.subr.bf16.mxu0 0
  %485 = vmatpush1.bf16.msra.mxu0 0
  %486 = vmatprep.subr.bf16.mxu0 0
  %487 = vmatpush1.bf16.msra.mxu0 0
  %488 = vmatprep.subr.bf16.mxu0 0
  %489 = vmatpush1.bf16.msra.mxu0 0
  %490 = vmatprep.subr.bf16.mxu0 0
  %491 = vmatpush1.bf16.msra.mxu0 0
  %492 = vmatprep.subr.bf16.mxu0 0
  %493 = vmatpush1.bf16.msra.mxu0 0
  %494 = vmatprep.subr.bf16.mxu0 0
  %495 = vmatpush1.bf16.msra.mxu0 0
  %496 = vmatprep.subr.bf16.mxu0 0
  %497 = vmatpush1.bf16.msra.mxu0 0
  %498 = vmatprep.subr.bf16.mxu0 0
  %499 = vmatpush1.bf16.msra.mxu0 0
  %500 = vmatprep.subr.bf16.mxu0 0
  %501 = vmatpush1.bf16.msra.mxu0 0
  %502 = vmatprep.subr.bf16.mxu0 0
  %503 = vmatpush1.bf16.msra.mxu0 0
  %504 = vmatprep.subr.bf16.mxu0 0
  %505 = vmatpush1.bf16.msra.mxu0 0
  %506 = vmatprep.subr.bf16.mxu0 0
  %507 = vmatpush1.bf16.msra.mxu0 0
  %508 = vmatprep.subr.bf16.mxu0 0
  %509 = vmatpush1.bf16.msra.mxu0 0
  %510 = vmatprep.mubr.bf16.mxu0 0
  %511 = vmatmul.mubr.bf16.gmra.mrb[0].mxu0 %v476
  %v512 = vpop.f32.mrb[0].mxu0
  %v513 = vadd.f32 0.0, %v512
  %v514 = vpop.f32.mrb[0].mxu0
  %v515 = vpop.f32.mrb[0].mxu0
  %v516 = vpop.f32.mrb[0].mxu0
  %517 = vdwg.mxu0
  %v518 = vadd.f32 %v140, %v513
  %v519 = vxor.u32 %v518, 2147483648
  %v520 = vmul.f32 %v519, 1.442695
  %v521 = vpow.pop %v520
  %v522 = vadd.f32 %v521, 1.0
  %v523 = vrcp.pop %v522
  %v524 = vmul.f32 1.0, %v523
  %v525 = vtanh.pop %v518
  %v526 = vmul.f32 %v524, %v459
  %528 = vrot.lane.b32.xlu0 %v525, 32
  %v529 = vpop.permute.xlu0 %528
  %v531 = vmul.f32 %v524, %v529
  %533 = vrot.lane.b32.xlu0 %v531, 32
  %v534 = vpop.permute.xlu0 %533
  %v536 = vadd.f32 %v526, %v534
  %v537 = vtanh.pop %v536
  %539 = vrot.lane.b32.xlu0 %v537, 32
  %v540 = vpop.permute.xlu0 %539
  %v542 = vmul.f32 %v524, %v540
  %544 = vrot.lane.b32.xlu0 %v542, 64
  %v545 = vpop.permute.xlu0 %544
  %547 = vst.msk [vmem:[#allocation2 + $0x20] sm:$0xff] %vm166, %v545
  %v548 = vpack.c.bf16 %v542, %v542
  %550 = vrot.lane.b32.xlu0 %v548, 64
  %v551 = vpop.permute.xlu0 %550
  %v553 = vsel %vm166, %v551, 0
  %555 = vmatprep.subr.bf16.mxu0 0
  %556 = vmatpush1.bf16.msra.mxu0 %v162
  %557 = vmatprep.subr.bf16.mxu0 0
  %558 = vmatpush1.bf16.msra.mxu0 %v163
  %559 = vmatprep.subr.bf16.mxu0 0
  %560 = vmatpush1.bf16.msra.mxu0 0
  %561 = vmatprep.subr.bf16.mxu0 0
  %562 = vmatpush1.bf16.msra.mxu0 0
  %563 = vmatprep.subr.bf16.mxu0 0
  %564 = vmatpush1.bf16.msra.mxu0 0
  %565 = vmatprep.subr.bf16.mxu0 0
  %566 = vmatpush1.bf16.msra.mxu0 0
  %567 = vmatprep.subr.bf16.mxu0 0
  %568 = vmatpush1.bf16.msra.mxu0 0
  %569 = vmatprep.subr.bf16.mxu0 0
  %570 = vmatpush1.bf16.msra.mxu0 0
  %571 = vmatprep.subr.bf16.mxu0 0
  %572 = vmatpush1.bf16.msra.mxu0 0
  %573 = vmatprep.subr.bf16.mxu0 0
  %574 = vmatpush1.bf16.msra.mxu0 0
  %575 = vmatprep.subr.bf16.mxu0 0
  %576 = vmatpush1.bf16.msra.mxu0 0
  %577 = vmatprep.subr.bf16.mxu0 0
  %578 = vmatpush1.bf16.msra.mxu0 0
  %579 = vmatprep.subr.bf16.mxu0 0
  %580 = vmatpush1.bf16.msra.mxu0 0
  %581 = vmatprep.subr.bf16.mxu0 0
  %582 = vmatpush1.bf16.msra.mxu0 0
  %583 = vmatprep.subr.bf16.mxu0 0
  %584 = vmatpush1.bf16.msra.mxu0 0
  %585 = vmatprep.subr.bf16.mxu0 0
  %586 = vmatpush1.bf16.msra.mxu0 0
  %587 = vmatprep.mubr.bf16.mxu0 0
  %588 = vmatmul.mubr.bf16.gmra.mrb[0].mxu0 %v553
  %v589 = vpop.f32.mrb[0].mxu0
  %v590 = vadd.f32 0.0, %v589
  %v591 = vpop.f32.mrb[0].mxu0
  %v592 = vpop.f32.mrb[0].mxu0
  %v593 = vpop.f32.mrb[0].mxu0
  %594 = vdwg.mxu0
  %v595 = vadd.f32 %v143, %v590
  %v596 = vxor.u32 %v595, 2147483648
  %v597 = vmul.f32 %v596, 1.442695
  %v598 = vpow.pop %v597
  %v599 = vadd.f32 %v598, 1.0
  %v600 = vrcp.pop %v599
  %v601 = vmul.f32 1.0, %v600
  %v602 = vtanh.pop %v595
  %v603 = vmul.f32 %v601, %v536
  %605 = vrot.lane.b32.xlu0 %v602, 32
  %v606 = vpop.permute.xlu0 %605
  %v608 = vmul.f32 %v601, %v606
  %610 = vrot.lane.b32.xlu0 %v608, 32
  %v611 = vpop.permute.xlu0 %610
  %v613 = vadd.f32 %v603, %v611
  %v614 = vtanh.pop %v613
  %616 = vrot.lane.b32.xlu0 %v614, 32
  %v617 = vpop.permute.xlu0 %616
  %v619 = vmul.f32 %v601, %v617
  %621 = vrot.lane.b32.xlu0 %v619, 64
  %v622 = vpop.permute.xlu0 %621
  %624 = vst.msk [vmem:[#allocation2 + $0x28] sm:$0xff] %vm166, %v622
  %v625 = vpack.c.bf16 %v619, %v619
  %627 = vrot.lane.b32.xlu0 %v625, 64
  %v628 = vpop.permute.xlu0 %627
  %v630 = vsel %vm166, %v628, 0
  %632 = vmatprep.subr.bf16.mxu0 0
  %633 = vmatpush1.bf16.msra.mxu0 %v162
  %634 = vmatprep.subr.bf16.mxu0 0
  %635 = vmatpush1.bf16.msra.mxu0 %v163
  %636 = vmatprep.subr.bf16.mxu0 0
  %637 = vmatpush1.bf16.msra.mxu0 0
  %638 = vmatprep.subr.bf16.mxu0 0
  %639 = vmatpush1.bf16.msra.mxu0 0
  %640 = vmatprep.subr.bf16.mxu0 0
  %641 = vmatpush1.bf16.msra.mxu0 0
  %642 = vmatprep.subr.bf16.mxu0 0
  %643 = vmatpush1.bf16.msra.mxu0 0
  %644 = vmatprep.subr.bf16.mxu0 0
  %645 = vmatpush1.bf16.msra.mxu0 0
  %646 = vmatprep.subr.bf16.mxu0 0
  %647 = vmatpush1.bf16.msra.mxu0 0
  %648 = vmatprep.subr.bf16.mxu0 0
  %649 = vmatpush1.bf16.msra.mxu0 0
  %650 = vmatprep.subr.bf16.mxu0 0
  %651 = vmatpush1.bf16.msra.mxu0 0
  %652 = vmatprep.subr.bf16.mxu0 0
  %653 = vmatpush1.bf16.msra.mxu0 0
  %654 = vmatprep.subr.bf16.mxu0 0
  %655 = vmatpush1.bf16.msra.mxu0 0
  %656 = vmatprep.subr.bf16.mxu0 0
  %657 = vmatpush1.bf16.msra.mxu0 0
  %658 = vmatprep.subr.bf16.mxu0 0
  %659 = vmatpush1.bf16.msra.mxu0 0
  %660 = vmatprep.subr.bf16.mxu0 0
  %661 = vmatpush1.bf16.msra.mxu0 0
  %662 = vmatprep.subr.bf16.mxu0 0
  %663 = vmatpush1.bf16.msra.mxu0 0
  %664 = vmatprep.mubr.bf16.mxu0 0
  %665 = vmatmul.mubr.bf16.gmra.mrb[0].mxu0 %v630
  %v666 = vpop.f32.mrb[0].mxu0
  %v667 = vadd.f32 0.0, %v666
  %v668 = vpop.f32.mrb[0].mxu0
  %v669 = vpop.f32.mrb[0].mxu0
  %v670 = vpop.f32.mrb[0].mxu0
  %671 = vdwg.mxu0
  %v672 = vadd.f32 %v148, %v667
  %v673 = vxor.u32 %v672, 2147483648
  %v674 = vmul.f32 %v673, 1.442695
  %v675 = vpow.pop %v674
  %v676 = vadd.f32 %v675, 1.0
  %v677 = vrcp.pop %v676
  %v678 = vmul.f32 1.0, %v677
  %v679 = vtanh.pop %v672
  %v680 = vmul.f32 %v678, %v613
  %682 = vrot.lane.b32.xlu0 %v679, 32
  %v683 = vpop.permute.xlu0 %682
  %v685 = vmul.f32 %v678, %v683
  %687 = vrot.lane.b32.xlu0 %v685, 32
  %v688 = vpop.permute.xlu0 %687
  %v690 = vadd.f32 %v680, %v688
  %v691 = vtanh.pop %v690
  %693 = vrot.lane.b32.xlu0 %v691, 32
  %v694 = vpop.permute.xlu0 %693
  %v696 = vmul.f32 %v678, %v694
  %698 = vrot.lane.b32.xlu0 %v696, 64
  %v699 = vpop.permute.xlu0 %698
  %701 = vst.msk [vmem:[#allocation2 + $0x30] sm:$0xff] %vm166, %v699
  %v702 = vpack.c.bf16 %v696, %v696
  %704 = vrot.lane.b32.xlu0 %v702, 64
  %v705 = vpop.permute.xlu0 %704
  %v707 = vsel %vm166, %v705, 0
  %709 = vmatprep.subr.bf16.mxu0 0
  %710 = vmatpush1.bf16.msra.mxu0 %v162
  %711 = vmatprep.subr.bf16.mxu0 0
  %712 = vmatpush1.bf16.msra.mxu0 %v163
  %713 = vmatprep.subr.bf16.mxu0 0
  %714 = vmatpush1.bf16.msra.mxu0 0
  %715 = vmatprep.subr.bf16.mxu0 0
  %716 = vmatpush1.bf16.msra.mxu0 0
  %717 = vmatprep.subr.bf16.mxu0 0
  %718 = vmatpush1.bf16.msra.mxu0 0
  %719 = vmatprep.subr.bf16.mxu0 0
  %720 = vmatpush1.bf16.msra.mxu0 0
  %721 = vmatprep.subr.bf16.mxu0 0
  %722 = vmatpush1.bf16.msra.mxu0 0
  %723 = vmatprep.subr.bf16.mxu0 0
  %724 = vmatpush1.bf16.msra.mxu0 0
  %725 = vmatprep.subr.bf16.mxu0 0
  %726 = vmatpush1.bf16.msra.mxu0 0
  %727 = vmatprep.subr.bf16.mxu0 0
  %728 = vmatpush1.bf16.msra.mxu0 0
  %729 = vmatprep.subr.bf16.mxu0 0
  %730 = vmatpush1.bf16.msra.mxu0 0
  %731 = vmatprep.subr.bf16.mxu0 0
  %732 = vmatpush1.bf16.msra.mxu0 0
  %733 = vmatprep.subr.bf16.mxu0 0
  %734 = vmatpush1.bf16.msra.mxu0 0
  %735 = vmatprep.subr.bf16.mxu0 0
  %736 = vmatpush1.bf16.msra.mxu0 0
  %737 = vmatprep.subr.bf16.mxu0 0
  %738 = vmatpush1.bf16.msra.mxu0 0
  %739 = vmatprep.subr.bf16.mxu0 0
  %740 = vmatpush1.bf16.msra.mxu0 0
  %741 = vmatprep.mubr.bf16.mxu0 0
  %742 = vmatmul.mubr.bf16.gmra.mrb[0].mxu0 %v707
  %v743 = vpop.f32.mrb[0].mxu0
  %v744 = vadd.f32 0.0, %v743
  %v745 = vpop.f32.mrb[0].mxu0
  %v746 = vpop.f32.mrb[0].mxu0
  %v747 = vpop.f32.mrb[0].mxu0
  %748 = vdwg.mxu0
  %v749 = vadd.f32 %v151, %v744
  %v750 = vxor.u32 %v749, 2147483648
  %v751 = vmul.f32 %v750, 1.442695
  %v752 = vpow.pop %v751
  %v753 = vadd.f32 %v752, 1.0
  %v754 = vrcp.pop %v753
  %v755 = vmul.f32 1.0, %v754
  %v756 = vtanh.pop %v749
  %v757 = vmul.f32 %v755, %v690
  %759 = vrot.lane.b32.xlu0 %v756, 32
  %v760 = vpop.permute.xlu0 %759
  %v762 = vmul.f32 %v755, %v760
  %764 = vrot.lane.b32.xlu0 %v762, 32
  %v765 = vpop.permute.xlu0 %764
  %v767 = vadd.f32 %v757, %v765
  %v768 = vtanh.pop %v767
  %770 = vrot.lane.b32.xlu0 %v768, 32
  %v771 = vpop.permute.xlu0 %770
  %v773 = vmul.f32 %v755, %v771
  %775 = vrot.lane.b32.xlu0 %v773, 64
  %v776 = vpop.permute.xlu0 %775
  %778 = vst.msk [vmem:[#allocation2 + $0x38] sm:$0xff] %vm166, %v776
  %v779 = vld [vmem:[#allocation2] sm:$0xff]
  %v780 = vld [vmem:[#allocation2 + $0x8] sm:$0xff]
  %v781 = vld [vmem:[#allocation2 + $0x10] sm:$0xff]
  %v782 = vld [vmem:[#allocation2 + $0x18] sm:$0xff]
  %v783 = vld [vmem:[#allocation2 + $0x20] sm:$0xff]
  %v784 = vld [vmem:[#allocation2 + $0x28] sm:$0xff]
  %v785 = vld [vmem:[#allocation2 + $0x30] sm:$0xff]
  %v786 = vld [vmem:[#allocation2 + $0x38] sm:$0xff]
  %v787 = vld [vmem:[%s4] sm:$0xf]
  %v788 = vld [vmem:[%s4 + $0x4] sm:$0xf]
  %v789 = vld [vmem:[%s4 + $0x8] sm:$0xf]
  %v790 = vld [vmem:[%s4 + $0xc] sm:$0xf]
  %v791 = vld [vmem:[%s5] sm:$0xf]
  %v792 = vld [vmem:[%s5 + $0x4] sm:$0xf]
  %v793 = vld [vmem:[%s5 + $0x8] sm:$0xf]
  %v794 = vld [vmem:[%s5 + $0xc] sm:$0xf]
  %v795 = vld [vmem:[%s6] sm:$0x1]
  %v796 = vpack.c.bf16 %v780, %v779
  %v797 = vpack.c.bf16 %v782, %v781
  %v798 = vpack.c.bf16 %v784, %v783
  %v799 = vpack.c.bf16 %v786, %v785
  %v801 = vlaneseq
  %v802 = vshrl.u32 %v801, 7
  %v803 = vsub.s32 0, %v802
  %v804 = vrot.slane %v795, %v803
  %v810 = vunpack.c.l.b16 %v787
  %v811 = vunpack.c.l.b16 %v788
  %v812 = vunpack.c.l.b16 %v789
  %v813 = vunpack.c.l.b16 %v790
  %v814 = vpack.c.b16 %v811, %v810
  %v815 = vpack.c.b16 %v813, %v812
  %v819 = vsel %vm166, %v796, 0
  %v822 = vsel %vm166, %v797, 0
  %v825 = vsel %vm166, %v798, 0
  %v828 = vsel %vm166, %v799, 0
  %830 = vmatprep.subr.bf16.mxu0 0
  %831 = vmatpush1.bf16.msra.mxu0 %v814
  %832 = vmatprep.subr.bf16.mxu0 0
  %833 = vmatpush1.bf16.msra.mxu0 %v815
  %834 = vmatprep.subr.bf16.mxu0 0
  %835 = vmatpush1.bf16.msra.mxu0 0
  %836 = vmatprep.subr.bf16.mxu0 0
  %837 = vmatpush1.bf16.msra.mxu0 0
  %838 = vmatprep.subr.bf16.mxu0 0
  %839 = vmatpush1.bf16.msra.mxu0 0
  %840 = vmatprep.subr.bf16.mxu0 0
  %841 = vmatpush1.bf16.msra.mxu0 0
  %842 = vmatprep.subr.bf16.mxu0 0
  %843 = vmatpush1.bf16.msra.mxu0 0
  %844 = vmatprep.subr.bf16.mxu0 0
  %845 = vmatpush1.bf16.msra.mxu0 0
  %846 = vmatprep.subr.bf16.mxu0 0
  %847 = vmatpush1.bf16.msra.mxu0 0
  %848 = vmatprep.subr.bf16.mxu0 0
  %849 = vmatpush1.bf16.msra.mxu0 0
  %850 = vmatprep.subr.bf16.mxu0 0
  %851 = vmatpush1.bf16.msra.mxu0 0
  %852 = vmatprep.subr.bf16.mxu0 0
  %853 = vmatpush1.bf16.msra.mxu0 0
  %854 = vmatprep.subr.bf16.mxu0 0
  %855 = vmatpush1.bf16.msra.mxu0 0
  %856 = vmatprep.subr.bf16.mxu0 0
  %857 = vmatpush1.bf16.msra.mxu0 0
  %858 = vmatprep.subr.bf16.mxu0 0
  %859 = vmatpush1.bf16.msra.mxu0 0
  %860 = vmatprep.subr.bf16.mxu0 0
  %861 = vmatpush1.bf16.msra.mxu0 0
  %862 = vmatprep.mubr.bf16.mxu0 0
  %863 = vmatmul.mubr.bf16.gmra.mrb[0].mxu0 %v819
  %v864 = vpop.f32.mrb[0].mxu0
  %v865 = vadd.f32 %v804, %v864
  %v866 = vpop.f32.mrb[0].mxu0
  %v867 = vpop.f32.mrb[0].mxu0
  %v868 = vadd.f32 %v804, %v867
  %v869 = vpop.f32.mrb[0].mxu0
  %870 = vmatprep.mubr.bf16.mxu0 0
  %871 = vmatmul.mubr.bf16.gmra.mrb[0].mxu0 %v822
  %v872 = vpop.f32.mrb[0].mxu0
  %v873 = vadd.f32 %v804, %v872
  %v874 = vpop.f32.mrb[0].mxu0
  %v875 = vpop.f32.mrb[0].mxu0
  %v876 = vadd.f32 %v804, %v875
  %v877 = vpop.f32.mrb[0].mxu0
  %878 = vmatprep.mubr.bf16.mxu0 0
  %879 = vmatmul.mubr.bf16.gmra.mrb[0].mxu0 %v825
  %v880 = vpop.f32.mrb[0].mxu0
  %v881 = vadd.f32 %v804, %v880
  %v882 = vpop.f32.mrb[0].mxu0
  %v883 = vpop.f32.mrb[0].mxu0
  %v884 = vadd.f32 %v804, %v883
  %v885 = vpop.f32.mrb[0].mxu0
  %886 = vmatprep.mubr.bf16.mxu0 0
  %887 = vmatmul.mubr.bf16.gmra.mrb[0].mxu0 %v828
  %v888 = vpop.f32.mrb[0].mxu0
  %v889 = vadd.f32 %v804, %v888
  %v890 = vpop.f32.mrb[0].mxu0
  %v891 = vpop.f32.mrb[0].mxu0
  %v892 = vadd.f32 %v804, %v891
  %v893 = vpop.f32.mrb[0].mxu0
  %894 = vdwg.mxu0
  %v899 = vunpack.c.l.b16 %v791
  %v900 = vunpack.c.l.b16 %v792
  %v901 = vunpack.c.l.b16 %v793
  %v902 = vunpack.c.l.b16 %v794
  %v903 = vpack.c.b16 %v900, %v899
  %v904 = vpack.c.b16 %v902, %v901
  %907 = vmatprep.subr.bf16.mxu0 0
  %908 = vmatpush1.bf16.msra.mxu0 %v903
  %909 = vmatprep.subr.bf16.mxu0 0
  %910 = vmatpush1.bf16.msra.mxu0 %v904
  %911 = vmatprep.subr.bf16.mxu0 0
  %912 = vmatpush1.bf16.msra.mxu0 0
  %913 = vmatprep.subr.bf16.mxu0 0
  %914 = vmatpush1.bf16.msra.mxu0 0
  %915 = vmatprep.subr.bf16.mxu0 0
  %916 = vmatpush1.bf16.msra.mxu0 0
  %917 = vmatprep.subr.bf16.mxu0 0
  %918 = vmatpush1.bf16.msra.mxu0 0
  %919 = vmatprep.subr.bf16.mxu0 0
  %920 = vmatpush1.bf16.msra.mxu0 0
  %921 = vmatprep.subr.bf16.mxu0 0
  %922 = vmatpush1.bf16.msra.mxu0 0
  %923 = vmatprep.subr.bf16.mxu0 0
  %924 = vmatpush1.bf16.msra.mxu0 0
  %925 = vmatprep.subr.bf16.mxu0 0
  %926 = vmatpush1.bf16.msra.mxu0 0
  %927 = vmatprep.subr.bf16.mxu0 0
  %928 = vmatpush1.bf16.msra.mxu0 0
  %929 = vmatprep.subr.bf16.mxu0 0
  %930 = vmatpush1.bf16.msra.mxu0 0
  %931 = vmatprep.subr.bf16.mxu0 0
  %932 = vmatpush1.bf16.msra.mxu0 0
  %933 = vmatprep.subr.bf16.mxu0 0
  %934 = vmatpush1.bf16.msra.mxu0 0
  %935 = vmatprep.subr.bf16.mxu0 0
  %936 = vmatpush1.bf16.msra.mxu0 0
  %937 = vmatprep.subr.bf16.mxu0 0
  %938 = vmatpush1.bf16.msra.mxu0 0
  %939 = vmatprep.mubr.bf16.mxu0 0
  %940 = vmatmul.mubr.bf16.gmra.mrb[0].mxu0 %v168
  %v941 = vpop.f32.mrb[0].mxu0
  %v942 = vadd.f32 0.0, %v941
  %v943 = vpop.f32.mrb[0].mxu0
  %v944 = vpop.f32.mrb[0].mxu0
  %v945 = vadd.f32 0.0, %v944
  %v946 = vpop.f32.mrb[0].mxu0
  %947 = vdwg.mxu0
  %v948 = vadd.f32 %v865, %v942
  %v949 = vadd.f32 %v868, %v945
  %v950 = vxor.u32 %v948, 2147483648
  %v951 = vxor.u32 %v949, 2147483648
  %v952 = vmul.f32 %v950, 1.442695
  %v953 = vpow.pop %v952
  %v954 = vmul.f32 %v951, 1.442695
  %v955 = vpow.pop %v954
  %v956 = vadd.f32 %v953, 1.0
  %v957 = vadd.f32 %v955, 1.0
  %v958 = vrcp.pop %v956
  %v959 = vmul.f32 1.0, %v958
  %v960 = vrcp.pop %v957
  %v961 = vmul.f32 1.0, %v960
  %v962 = vtanh.pop %v948
  %v963 = vtanh.pop %v949
  %v964 = vmul.f32 %v959, 0.0
  %v965 = vmul.f32 %v961, 0.0
  %968 = vrot.lane.b32.xlu0 %v962, 32
  %v969 = vpop.permute.xlu0 %968
  %970 = vrot.lane.b32.xlu0 %v963, 32
  %v971 = vpop.permute.xlu0 %970
  %v974 = vmul.f32 %v959, %v969
  %v975 = vmul.f32 %v961, %v971
  %978 = vrot.lane.b32.xlu0 %v974, 32
  %v979 = vpop.permute.xlu0 %978
  %980 = vrot.lane.b32.xlu0 %v975, 32
  %v981 = vpop.permute.xlu0 %980
  %v984 = vadd.f32 %v964, %v979
  %v985 = vadd.f32 %v965, %v981
  %v986 = vtanh.pop %v984
  %v987 = vtanh.pop %v985
  %990 = vrot.lane.b32.xlu0 %v986, 32
  %v991 = vpop.permute.xlu0 %990
  %992 = vrot.lane.b32.xlu0 %v987, 32
  %v993 = vpop.permute.xlu0 %992
  %v996 = vmul.f32 %v959, %v991
  %v997 = vmul.f32 %v961, %v993
  %1000 = vrot.lane.b32.xlu0 %v996, 64
  %v1001 = vpop.permute.xlu0 %1000
  %1002 = vrot.lane.b32.xlu0 %v997, 64
  %v1003 = vpop.permute.xlu0 %1002
  %1006 = vst.msk [vmem:[#allocation2] sm:$0xff] %vm166, %v1001
  %1007 = vst.msk [vmem:[#allocation2 + $0x8] sm:$0xff] %vm166, %v1003
  %v1008 = vpack.c.bf16 %v997, %v996
  %1010 = vrot.lane.b32.xlu0 %v1008, 64
  %v1011 = vpop.permute.xlu0 %1010
  %v1013 = vsel %vm166, %v1011, 0
  %1015 = vmatprep.subr.bf16.mxu0 0
  %1016 = vmatpush1.bf16.msra.mxu0 %v903
  %1017 = vmatprep.subr.bf16.mxu0 0
  %1018 = vmatpush1.bf16.msra.mxu0 %v904
  %1019 = vmatprep.subr.bf16.mxu0 0
  %1020 = vmatpush1.bf16.msra.mxu0 0
  %1021 = vmatprep.subr.bf16.mxu0 0
  %1022 = vmatpush1.bf16.msra.mxu0 0
  %1023 = vmatprep.subr.bf16.mxu0 0
  %1024 = vmatpush1.bf16.msra.mxu0 0
  %1025 = vmatprep.subr.bf16.mxu0 0
  %1026 = vmatpush1.bf16.msra.mxu0 0
  %1027 = vmatprep.subr.bf16.mxu0 0
  %1028 = vmatpush1.bf16.msra.mxu0 0
  %1029 = vmatprep.subr.bf16.mxu0 0
  %1030 = vmatpush1.bf16.msra.mxu0 0
  %1031 = vmatprep.subr.bf16.mxu0 0
  %1032 = vmatpush1.bf16.msra.mxu0 0
  %1033 = vmatprep.subr.bf16.mxu0 0
  %1034 = vmatpush1.bf16.msra.mxu0 0
  %1035 = vmatprep.subr.bf16.mxu0 0
  %1036 = vmatpush1.bf16.msra.mxu0 0
  %1037 = vmatprep.subr.bf16.mxu0 0
  %1038 = vmatpush1.bf16.msra.mxu0 0
  %1039 = vmatprep.subr.bf16.mxu0 0
  %1040 = vmatpush1.bf16.msra.mxu0 0
  %1041 = vmatprep.subr.bf16.mxu0 0
  %1042 = vmatpush1.bf16.msra.mxu0 0
  %1043 = vmatprep.subr.bf16.mxu0 0
  %1044 = vmatpush1.bf16.msra.mxu0 0
  %1045 = vmatprep.subr.bf16.mxu0 0
  %1046 = vmatpush1.bf16.msra.mxu0 0
  %1047 = vmatprep.mubr.bf16.mxu0 0
  %1048 = vmatmul.mubr.bf16.gmra.mrb[0].mxu0 %v1013
  %v1049 = vpop.f32.mrb[0].mxu0
  %v1050 = vadd.f32 0.0, %v1049
  %v1051 = vpop.f32.mrb[0].mxu0
  %v1052 = vpop.f32.mrb[0].mxu0
  %v1053 = vadd.f32 0.0, %v1052
  %v1054 = vpop.f32.mrb[0].mxu0
  %1055 = vdwg.mxu0
  %v1056 = vadd.f32 %v873, %v1050
  %v1057 = vadd.f32 %v876, %v1053
  %v1058 = vxor.u32 %v1056, 2147483648
  %v1059 = vxor.u32 %v1057, 2147483648
  %v1060 = vmul.f32 %v1058, 1.442695
  %v1061 = vpow.pop %v1060
  %v1062 = vmul.f32 %v1059, 1.442695
  %v1063 = vpow.pop %v1062
  %v1064 = vadd.f32 %v1061, 1.0
  %v1065 = vadd.f32 %v1063, 1.0
  %v1066 = vrcp.pop %v1064
  %v1067 = vmul.f32 1.0, %v1066
  %v1068 = vrcp.pop %v1065
  %v1069 = vmul.f32 1.0, %v1068
  %v1070 = vtanh.pop %v1056
  %v1071 = vtanh.pop %v1057
  %v1072 = vmul.f32 %v1067, %v984
  %v1073 = vmul.f32 %v1069, %v985
  %1076 = vrot.lane.b32.xlu0 %v1070, 32
  %v1077 = vpop.permute.xlu0 %1076
  %1078 = vrot.lane.b32.xlu0 %v1071, 32
  %v1079 = vpop.permute.xlu0 %1078
  %v1082 = vmul.f32 %v1067, %v1077
  %v1083 = vmul.f32 %v1069, %v1079
  %1086 = vrot.lane.b32.xlu0 %v1082, 32
  %v1087 = vpop.permute.xlu0 %1086
  %1088 = vrot.lane.b32.xlu0 %v1083, 32
  %v1089 = vpop.permute.xlu0 %1088
  %v1092 = vadd.f32 %v1072, %v1087
  %v1093 = vadd.f32 %v1073, %v1089
  %v1094 = vtanh.pop %v1092
  %v1095 = vtanh.pop %v1093
  %1098 = vrot.lane.b32.xlu0 %v1094, 32
  %v1099 = vpop.permute.xlu0 %1098
  %1100 = vrot.lane.b32.xlu0 %v1095, 32
  %v1101 = vpop.permute.xlu0 %1100
  %v1104 = vmul.f32 %v1067, %v1099
  %v1105 = vmul.f32 %v1069, %v1101
  %1108 = vrot.lane.b32.xlu0 %v1104, 64
  %v1109 = vpop.permute.xlu0 %1108
  %1110 = vrot.lane.b32.xlu0 %v1105, 64
  %v1111 = vpop.permute.xlu0 %1110
  %1114 = vst.msk [vmem:[#allocation2 + $0x10] sm:$0xff] %vm166, %v1109
  %1115 = vst.msk [vmem:[#allocation2 + $0x18] sm:$0xff] %vm166, %v1111
  %v1116 = vpack.c.bf16 %v1105, %v1104
  %1118 = vrot.lane.b32.xlu0 %v1116, 64
  %v1119 = vpop.permute.xlu0 %1118
  %v1121 = vsel %vm166, %v1119, 0
  %1123 = vmatprep.subr.bf16.mxu0 0
  %1124 = vmatpush1.bf16.msra.mxu0 %v903
  %1125 = vmatprep.subr.bf16.mxu0 0
  %1126 = vmatpush1.bf16.msra.mxu0 %v904
  %1127 = vmatprep.subr.bf16.mxu0 0
  %1128 = vmatpush1.bf16.msra.mxu0 0
  %1129 = vmatprep.subr.bf16.mxu0 0
  %1130 = vmatpush1.bf16.msra.mxu0 0
  %1131 = vmatprep.subr.bf16.mxu0 0
  %1132 = vmatpush1.bf16.msra.mxu0 0
  %1133 = vmatprep.subr.bf16.mxu0 0
  %1134 = vmatpush1.bf16.msra.mxu0 0
  %1135 = vmatprep.subr.bf16.mxu0 0
  %1136 = vmatpush1.bf16.msra.mxu0 0
  %1137 = vmatprep.subr.bf16.mxu0 0
  %1138 = vmatpush1.bf16.msra.mxu0 0
  %1139 = vmatprep.subr.bf16.mxu0 0
  %1140 = vmatpush1.bf16.msra.mxu0 0
  %1141 = vmatprep.subr.bf16.mxu0 0
  %1142 = vmatpush1.bf16.msra.mxu0 0
  %1143 = vmatprep.subr.bf16.mxu0 0
  %1144 = vmatpush1.bf16.msra.mxu0 0
  %1145 = vmatprep.subr.bf16.mxu0 0
  %1146 = vmatpush1.bf16.msra.mxu0 0
  %1147 = vmatprep.subr.bf16.mxu0 0
  %1148 = vmatpush1.bf16.msra.mxu0 0
  %1149 = vmatprep.subr.bf16.mxu0 0
  %1150 = vmatpush1.bf16.msra.mxu0 0
  %1151 = vmatprep.subr.bf16.mxu0 0
  %1152 = vmatpush1.bf16.msra.mxu0 0
  %1153 = vmatprep.subr.bf16.mxu0 0
  %1154 = vmatpush1.bf16.msra.mxu0 0
  %1155 = vmatprep.mubr.bf16.mxu0 0
  %1156 = vmatmul.mubr.bf16.gmra.mrb[0].mxu0 %v1121
  %v1157 = vpop.f32.mrb[0].mxu0
  %v1158 = vadd.f32 0.0, %v1157
  %v1159 = vpop.f32.mrb[0].mxu0
  %v1160 = vpop.f32.mrb[0].mxu0
  %v1161 = vadd.f32 0.0, %v1160
  %v1162 = vpop.f32.mrb[0].mxu0
  %1163 = vdwg.mxu0
  %v1164 = vadd.f32 %v881, %v1158
  %v1165 = vadd.f32 %v884, %v1161
  %v1166 = vxor.u32 %v1164, 2147483648
  %v1167 = vxor.u32 %v1165, 2147483648
  %v1168 = vmul.f32 %v1166, 1.442695
  %v1169 = vpow.pop %v1168
  %v1170 = vmul.f32 %v1167, 1.442695
  %v1171 = vpow.pop %v1170
  %v1172 = vadd.f32 %v1169, 1.0
  %v1173 = vadd.f32 %v1171, 1.0
  %v1174 = vrcp.pop %v1172
  %v1175 = vmul.f32 1.0, %v1174
  %v1176 = vrcp.pop %v1173
  %v1177 = vmul.f32 1.0, %v1176
  %v1178 = vtanh.pop %v1164
  %v1179 = vtanh.pop %v1165
  %v1180 = vmul.f32 %v1175, %v1092
  %v1181 = vmul.f32 %v1177, %v1093
  %1184 = vrot.lane.b32.xlu0 %v1178, 32
  %v1185 = vpop.permute.xlu0 %1184
  %1186 = vrot.lane.b32.xlu0 %v1179, 32
  %v1187 = vpop.permute.xlu0 %1186
  %v1190 = vmul.f32 %v1175, %v1185
  %v1191 = vmul.f32 %v1177, %v1187
  %1194 = vrot.lane.b32.xlu0 %v1190, 32
  %v1195 = vpop.permute.xlu0 %1194
  %1196 = vrot.lane.b32.xlu0 %v1191, 32
  %v1197 = vpop.permute.xlu0 %1196
  %v1200 = vadd.f32 %v1180, %v1195
  %v1201 = vadd.f32 %v1181, %v1197
  %v1202 = vtanh.pop %v1200
  %v1203 = vtanh.pop %v1201
  %1206 = vrot.lane.b32.xlu0 %v1202, 32
  %v1207 = vpop.permute.xlu0 %1206
  %1208 = vrot.lane.b32.xlu0 %v1203, 32
  %v1209 = vpop.permute.xlu0 %1208
  %v1212 = vmul.f32 %v1175, %v1207
  %v1213 = vmul.f32 %v1177, %v1209
  %1216 = vrot.lane.b32.xlu0 %v1212, 64
  %v1217 = vpop.permute.xlu0 %1216
  %1218 = vrot.lane.b32.xlu0 %v1213, 64
  %v1219 = vpop.permute.xlu0 %1218
  %1222 = vst.msk [vmem:[#allocation2 + $0x20] sm:$0xff] %vm166, %v1217
  %1223 = vst.msk [vmem:[#allocation2 + $0x28] sm:$0xff] %vm166, %v1219
  %v1224 = vpack.c.bf16 %v1213, %v1212
  %1226 = vrot.lane.b32.xlu0 %v1224, 64
  %v1227 = vpop.permute.xlu0 %1226
  %v1229 = vsel %vm166, %v1227, 0
  %1231 = vmatprep.subr.bf16.mxu0 0
  %1232 = vmatpush1.bf16.msra.mxu0 %v903
  %1233 = vmatprep.subr.bf16.mxu0 0
  %1234 = vmatpush1.bf16.msra.mxu0 %v904
  %1235 = vmatprep.subr.bf16.mxu0 0
  %1236 = vmatpush1.bf16.msra.mxu0 0
  %1237 = vmatprep.subr.bf16.mxu0 0
  %1238 = vmatpush1.bf16.msra.mxu0 0
  %1239 = vmatprep.subr.bf16.mxu0 0
  %1240 = vmatpush1.bf16.msra.mxu0 0
  %1241 = vmatprep.subr.bf16.mxu0 0
  %1242 = vmatpush1.bf16.msra.mxu0 0
  %1243 = vmatprep.subr.bf16.mxu0 0
  %1244 = vmatpush1.bf16.msra.mxu0 0
  %1245 = vmatprep.subr.bf16.mxu0 0
  %1246 = vmatpush1.bf16.msra.mxu0 0
  %1247 = vmatprep.subr.bf16.mxu0 0
  %1248 = vmatpush1.bf16.msra.mxu0 0
  %1249 = vmatprep.subr.bf16.mxu0 0
  %1250 = vmatpush1.bf16.msra.mxu0 0
  %1251 = vmatprep.subr.bf16.mxu0 0
  %1252 = vmatpush1.bf16.msra.mxu0 0
  %1253 = vmatprep.subr.bf16.mxu0 0
  %1254 = vmatpush1.bf16.msra.mxu0 0
  %1255 = vmatprep.subr.bf16.mxu0 0
  %1256 = vmatpush1.bf16.msra.mxu0 0
  %1257 = vmatprep.subr.bf16.mxu0 0
  %1258 = vmatpush1.bf16.msra.mxu0 0
  %1259 = vmatprep.subr.bf16.mxu0 0
  %1260 = vmatpush1.bf16.msra.mxu0 0
  %1261 = vmatprep.subr.bf16.mxu0 0
  %1262 = vmatpush1.bf16.msra.mxu0 0
  %1263 = vmatprep.mubr.bf16.mxu0 0
  %1264 = vmatmul.mubr.bf16.gmra.mrb[0].mxu0 %v1229
  %v1265 = vpop.f32.mrb[0].mxu0
  %v1266 = vadd.f32 0.0, %v1265
  %v1267 = vpop.f32.mrb[0].mxu0
  %v1268 = vpop.f32.mrb[0].mxu0
  %v1269 = vadd.f32 0.0, %v1268
  %v1270 = vpop.f32.mrb[0].mxu0
  %1271 = vdwg.mxu0
  %v1272 = vadd.f32 %v889, %v1266
  %v1273 = vadd.f32 %v892, %v1269
  %v1274 = vxor.u32 %v1272, 2147483648
  %v1275 = vxor.u32 %v1273, 2147483648
  %v1276 = vmul.f32 %v1274, 1.442695
  %v1277 = vpow.pop %v1276
  %v1278 = vmul.f32 %v1275, 1.442695
  %v1279 = vpow.pop %v1278
  %v1280 = vadd.f32 %v1277, 1.0
  %v1281 = vadd.f32 %v1279, 1.0
  %v1282 = vrcp.pop %v1280
  %v1283 = vmul.f32 1.0, %v1282
  %v1284 = vrcp.pop %v1281
  %v1285 = vmul.f32 1.0, %v1284
  %v1286 = vtanh.pop %v1272
  %v1287 = vtanh.pop %v1273
  %v1288 = vmul.f32 %v1283, %v1200
  %v1289 = vmul.f32 %v1285, %v1201
  %1292 = vrot.lane.b32.xlu0 %v1286, 32
  %v1293 = vpop.permute.xlu0 %1292
  %1294 = vrot.lane.b32.xlu0 %v1287, 32
  %v1295 = vpop.permute.xlu0 %1294
  %v1298 = vmul.f32 %v1283, %v1293
  %v1299 = vmul.f32 %v1285, %v1295
  %1302 = vrot.lane.b32.xlu0 %v1298, 32
  %v1303 = vpop.permute.xlu0 %1302
  %1304 = vrot.lane.b32.xlu0 %v1299, 32
  %v1305 = vpop.permute.xlu0 %1304
  %v1308 = vadd.f32 %v1288, %v1303
  %v1309 = vadd.f32 %v1289, %v1305
  %v1310 = vtanh.pop %v1308
  %v1311 = vtanh.pop %v1309
  %1314 = vrot.lane.b32.xlu0 %v1310, 32
  %v1315 = vpop.permute.xlu0 %1314
  %1316 = vrot.lane.b32.xlu0 %v1311, 32
  %v1317 = vpop.permute.xlu0 %1316
  %v1320 = vmul.f32 %v1283, %v1315
  %v1321 = vmul.f32 %v1285, %v1317
  %1324 = vrot.lane.b32.xlu0 %v1320, 64
  %v1325 = vpop.permute.xlu0 %1324
  %1326 = vrot.lane.b32.xlu0 %v1321, 64
  %v1327 = vpop.permute.xlu0 %1326
  %1330 = vst.msk [vmem:[#allocation2 + $0x30] sm:$0xff] %vm166, %v1325
  %1331 = vst.msk [vmem:[#allocation2 + $0x38] sm:$0xff] %vm166, %v1327
  %v1332 = vld [vmem:[#allocation2] sm:$0xff]
  %v1333 = vld [vmem:[#allocation2 + $0x8] sm:$0xff]
  %v1334 = vld [vmem:[#allocation2 + $0x10] sm:$0xff]
  %v1335 = vld [vmem:[#allocation2 + $0x18] sm:$0xff]
  %v1336 = vld [vmem:[#allocation2 + $0x20] sm:$0xff]
  %v1337 = vld [vmem:[#allocation2 + $0x28] sm:$0xff]
  %v1338 = vld [vmem:[#allocation2 + $0x30] sm:$0xff]
  %v1339 = vld [vmem:[#allocation2 + $0x38] sm:$0xff]
  %v1340 = vld [vmem:[%s7] sm:$0xf]
  %v1341 = vld [vmem:[%s7 + $0x4] sm:$0xf]
  %v1342 = vld [vmem:[%s7 + $0x8] sm:$0xf]
  %v1343 = vld [vmem:[%s7 + $0xc] sm:$0xf]
  %v1344 = vld [vmem:[%s8] sm:$0xf]
  %v1345 = vld [vmem:[%s8 + $0x4] sm:$0xf]
  %v1346 = vld [vmem:[%s8 + $0x8] sm:$0xf]
  %v1347 = vld [vmem:[%s8 + $0xc] sm:$0xf]
  %v1348 = vld [vmem:[%s9] sm:$0x1]
  %v1349 = vpack.c.bf16 %v1333, %v1332
  %v1350 = vpack.c.bf16 %v1335, %v1334
  %v1351 = vpack.c.bf16 %v1337, %v1336
  %v1352 = vpack.c.bf16 %v1339, %v1338
  %v1354 = vlaneseq
  %v1355 = vshrl.u32 %v1354, 7
  %v1356 = vsub.s32 0, %v1355
  %v1357 = vrot.slane %v1348, %v1356
  %v1363 = vunpack.c.l.b16 %v1340
  %v1364 = vunpack.c.l.b16 %v1341
  %v1365 = vunpack.c.l.b16 %v1342
  %v1366 = vunpack.c.l.b16 %v1343
  %v1367 = vpack.c.b16 %v1364, %v1363
  %v1368 = vpack.c.b16 %v1366, %v1365
  %v1372 = vsel %vm166, %v1349, 0
  %v1375 = vsel %vm166, %v1350, 0
  %v1378 = vsel %vm166, %v1351, 0
  %v1381 = vsel %vm166, %v1352, 0
  %1383 = vmatprep.subr.bf16.mxu0 0
  %1384 = vmatpush1.bf16.msra.mxu0 %v1367
  %1385 = vmatprep.subr.bf16.mxu0 0
  %1386 = vmatpush1.bf16.msra.mxu0 %v1368
  %1387 = vmatprep.subr.bf16.mxu0 0
  %1388 = vmatpush1.bf16.msra.mxu0 0
  %1389 = vmatprep.subr.bf16.mxu0 0
  %1390 = vmatpush1.bf16.msra.mxu0 0
  %1391 = vmatprep.subr.bf16.mxu0 0
  %1392 = vmatpush1.bf16.msra.mxu0 0
  %1393 = vmatprep.subr.bf16.mxu0 0
  %1394 = vmatpush1.bf16.msra.mxu0 0
  %1395 = vmatprep.subr.bf16.mxu0 0
  %1396 = vmatpush1.bf16.msra.mxu0 0
  %1397 = vmatprep.subr.bf16.mxu0 0
  %1398 = vmatpush1.bf16.msra.mxu0 0
  %1399 = vmatprep.subr.bf16.mxu0 0
  %1400 = vmatpush1.bf16.msra.mxu0 0
  %1401 = vmatprep.subr.bf16.mxu0 0
  %1402 = vmatpush1.bf16.msra.mxu0 0
  %1403 = vmatprep.subr.bf16.mxu0 0
  %1404 = vmatpush1.bf16.msra.mxu0 0
  %1405 = vmatprep.subr.bf16.mxu0 0
  %1406 = vmatpush1.bf16.msra.mxu0 0
  %1407 = vmatprep.subr.bf16.mxu0 0
  %1408 = vmatpush1.bf16.msra.mxu0 0
  %1409 = vmatprep.subr.bf16.mxu0 0
  %1410 = vmatpush1.bf16.msra.mxu0 0
  %1411 = vmatprep.subr.bf16.mxu0 0
  %1412 = vmatpush1.bf16.msra.mxu0 0
  %1413 = vmatprep.subr.bf16.mxu0 0
  %1414 = vmatpush1.bf16.msra.mxu0 0
  %1415 = vmatprep.mubr.bf16.mxu0 0
  %1416 = vmatmul.mubr.bf16.gmra.mrb[0].mxu0 %v1372
  %v1417 = vpop.f32.mrb[0].mxu0
  %v1418 = vadd.f32 %v1357, %v1417
  %v1419 = vpop.f32.mrb[0].mxu0
  %v1420 = vpop.f32.mrb[0].mxu0
  %v1421 = vadd.f32 %v1357, %v1420
  %v1422 = vpop.f32.mrb[0].mxu0
  %1423 = vmatprep.mubr.bf16.mxu0 0
  %1424 = vmatmul.mubr.bf16.gmra.mrb[0].mxu0 %v1375
  %v1425 = vpop.f32.mrb[0].mxu0
  %v1426 = vadd.f32 %v1357, %v1425
  %v1427 = vpop.f32.mrb[0].mxu0
  %v1428 = vpop.f32.mrb[0].mxu0
  %v1429 = vadd.f32 %v1357, %v1428
  %v1430 = vpop.f32.mrb[0].mxu0
  %1431 = vmatprep.mubr.bf16.mxu0 0
  %1432 = vmatmul.mubr.bf16.gmra.mrb[0].mxu0 %v1378
  %v1433 = vpop.f32.mrb[0].mxu0
  %v1434 = vadd.f32 %v1357, %v1433
  %v1435 = vpop.f32.mrb[0].mxu0
  %v1436 = vpop.f32.mrb[0].mxu0
  %v1437 = vadd.f32 %v1357, %v1436
  %v1438 = vpop.f32.mrb[0].mxu0
  %1439 = vmatprep.mubr.bf16.mxu0 0
  %1440 = vmatmul.mubr.bf16.gmra.mrb[0].mxu0 %v1381
  %v1441 = vpop.f32.mrb[0].mxu0
  %v1442 = vadd.f32 %v1357, %v1441
  %v1443 = vpop.f32.mrb[0].mxu0
  %v1444 = vpop.f32.mrb[0].mxu0
  %v1445 = vadd.f32 %v1357, %v1444
  %v1446 = vpop.f32.mrb[0].mxu0
  %1447 = vdwg.mxu0
  %v1452 = vunpack.c.l.b16 %v1344
  %v1453 = vunpack.c.l.b16 %v1345
  %v1454 = vunpack.c.l.b16 %v1346
  %v1455 = vunpack.c.l.b16 %v1347
  %v1456 = vpack.c.b16 %v1453, %v1452
  %v1457 = vpack.c.b16 %v1455, %v1454
  %1460 = vmatprep.subr.bf16.mxu0 0
  %1461 = vmatpush1.bf16.msra.mxu0 %v1456
  %1462 = vmatprep.subr.bf16.mxu0 0
  %1463 = vmatpush1.bf16.msra.mxu0 %v1457
  %1464 = vmatprep.subr.bf16.mxu0 0
  %1465 = vmatpush1.bf16.msra.mxu0 0
  %1466 = vmatprep.subr.bf16.mxu0 0
  %1467 = vmatpush1.bf16.msra.mxu0 0
  %1468 = vmatprep.subr.bf16.mxu0 0
  %1469 = vmatpush1.bf16.msra.mxu0 0
  %1470 = vmatprep.subr.bf16.mxu0 0
  %1471 = vmatpush1.bf16.msra.mxu0 0
  %1472 = vmatprep.subr.bf16.mxu0 0
  %1473 = vmatpush1.bf16.msra.mxu0 0
  %1474 = vmatprep.subr.bf16.mxu0 0
  %1475 = vmatpush1.bf16.msra.mxu0 0
  %1476 = vmatprep.subr.bf16.mxu0 0
  %1477 = vmatpush1.bf16.msra.mxu0 0
  %1478 = vmatprep.subr.bf16.mxu0 0
  %1479 = vmatpush1.bf16.msra.mxu0 0
  %1480 = vmatprep.subr.bf16.mxu0 0
  %1481 = vmatpush1.bf16.msra.mxu0 0
  %1482 = vmatprep.subr.bf16.mxu0 0
  %1483 = vmatpush1.bf16.msra.mxu0 0
  %1484 = vmatprep.subr.bf16.mxu0 0
  %1485 = vmatpush1.bf16.msra.mxu0 0
  %1486 = vmatprep.subr.bf16.mxu0 0
  %1487 = vmatpush1.bf16.msra.mxu0 0
  %1488 = vmatprep.subr.bf16.mxu0 0
  %1489 = vmatpush1.bf16.msra.mxu0 0
  %1490 = vmatprep.subr.bf16.mxu0 0
  %1491 = vmatpush1.bf16.msra.mxu0 0
  %1492 = vmatprep.mubr.bf16.mxu0 0
  %1493 = vmatmul.mubr.bf16.gmra.mrb[0].mxu0 %v168
  %v1494 = vpop.f32.mrb[0].mxu0
  %v1495 = vadd.f32 0.0, %v1494
  %v1496 = vpop.f32.mrb[0].mxu0
  %v1497 = vpop.f32.mrb[0].mxu0
  %v1498 = vadd.f32 0.0, %v1497
  %v1499 = vpop.f32.mrb[0].mxu0
  %1500 = vdwg.mxu0
  %v1501 = vadd.f32 %v1418, %v1495
  %v1502 = vadd.f32 %v1421, %v1498
  %v1503 = vxor.u32 %v1501, 2147483648
  %v1504 = vxor.u32 %v1502, 2147483648
  %v1505 = vmul.f32 %v1503, 1.442695
  %v1506 = vpow.pop %v1505
  %v1507 = vmul.f32 %v1504, 1.442695
  %v1508 = vpow.pop %v1507
  %v1509 = vadd.f32 %v1506, 1.0
  %v1510 = vadd.f32 %v1508, 1.0
  %v1511 = vrcp.pop %v1509
  %v1512 = vmul.f32 1.0, %v1511
  %v1513 = vrcp.pop %v1510
  %v1514 = vmul.f32 1.0, %v1513
  %v1515 = vtanh.pop %v1501
  %v1516 = vtanh.pop %v1502
  %v1517 = vmul.f32 %v1512, 0.0
  %v1518 = vmul.f32 %v1514, 0.0
  %1521 = vrot.lane.b32.xlu0 %v1515, 32
  %v1522 = vpop.permute.xlu0 %1521
  %1523 = vrot.lane.b32.xlu0 %v1516, 32
  %v1524 = vpop.permute.xlu0 %1523
  %v1527 = vmul.f32 %v1512, %v1522
  %v1528 = vmul.f32 %v1514, %v1524
  %1531 = vrot.lane.b32.xlu0 %v1527, 32
  %v1532 = vpop.permute.xlu0 %1531
  %1533 = vrot.lane.b32.xlu0 %v1528, 32
  %v1534 = vpop.permute.xlu0 %1533
  %v1537 = vadd.f32 %v1517, %v1532
  %v1538 = vadd.f32 %v1518, %v1534
  %v1539 = vtanh.pop %v1537
  %v1540 = vtanh.pop %v1538
  %1543 = vrot.lane.b32.xlu0 %v1539, 32
  %v1544 = vpop.permute.xlu0 %1543
  %1545 = vrot.lane.b32.xlu0 %v1540, 32
  %v1546 = vpop.permute.xlu0 %1545
  %v1549 = vmul.f32 %v1512, %v1544
  %v1550 = vmul.f32 %v1514, %v1546
  %1553 = vrot.lane.b32.xlu0 %v1549, 64
  %v1554 = vpop.permute.xlu0 %1553
  %1555 = vrot.lane.b32.xlu0 %v1550, 64
  %v1556 = vpop.permute.xlu0 %1555
  %1559 = vst.msk [vmem:[#allocation2] sm:$0xff] %vm166, %v1554
  %1560 = vst.msk [vmem:[#allocation2 + $0x8] sm:$0xff] %vm166, %v1556
  %v1561 = vpack.c.bf16 %v1550, %v1549
  %1563 = vrot.lane.b32.xlu0 %v1561, 64
  %v1564 = vpop.permute.xlu0 %1563
  %v1566 = vsel %vm166, %v1564, 0
  %1568 = vmatprep.subr.bf16.mxu0 0
  %1569 = vmatpush1.bf16.msra.mxu0 %v1456
  %1570 = vmatprep.subr.bf16.mxu0 0
  %1571 = vmatpush1.bf16.msra.mxu0 %v1457
  %1572 = vmatprep.subr.bf16.mxu0 0
  %1573 = vmatpush1.bf16.msra.mxu0 0
  %1574 = vmatprep.subr.bf16.mxu0 0
  %1575 = vmatpush1.bf16.msra.mxu0 0
  %1576 = vmatprep.subr.bf16.mxu0 0
  %1577 = vmatpush1.bf16.msra.mxu0 0
  %1578 = vmatprep.subr.bf16.mxu0 0
  %1579 = vmatpush1.bf16.msra.mxu0 0
  %1580 = vmatprep.subr.bf16.mxu0 0
  %1581 = vmatpush1.bf16.msra.mxu0 0
  %1582 = vmatprep.subr.bf16.mxu0 0
  %1583 = vmatpush1.bf16.msra.mxu0 0
  %1584 = vmatprep.subr.bf16.mxu0 0
  %1585 = vmatpush1.bf16.msra.mxu0 0
  %1586 = vmatprep.subr.bf16.mxu0 0
  %1587 = vmatpush1.bf16.msra.mxu0 0
  %1588 = vmatprep.subr.bf16.mxu0 0
  %1589 = vmatpush1.bf16.msra.mxu0 0
  %1590 = vmatprep.subr.bf16.mxu0 0
  %1591 = vmatpush1.bf16.msra.mxu0 0
  %1592 = vmatprep.subr.bf16.mxu0 0
  %1593 = vmatpush1.bf16.msra.mxu0 0
  %1594 = vmatprep.subr.bf16.mxu0 0
  %1595 = vmatpush1.bf16.msra.mxu0 0
  %1596 = vmatprep.subr.bf16.mxu0 0
  %1597 = vmatpush1.bf16.msra.mxu0 0
  %1598 = vmatprep.subr.bf16.mxu0 0
  %1599 = vmatpush1.bf16.msra.mxu0 0
  %1600 = vmatprep.mubr.bf16.mxu0 0
  %1601 = vmatmul.mubr.bf16.gmra.mrb[0].mxu0 %v1566
  %v1602 = vpop.f32.mrb[0].mxu0
  %v1603 = vadd.f32 0.0, %v1602
  %v1604 = vpop.f32.mrb[0].mxu0
  %v1605 = vpop.f32.mrb[0].mxu0
  %v1606 = vadd.f32 0.0, %v1605
  %v1607 = vpop.f32.mrb[0].mxu0
  %1608 = vdwg.mxu0
  %v1609 = vadd.f32 %v1426, %v1603
  %v1610 = vadd.f32 %v1429, %v1606
  %v1611 = vxor.u32 %v1609, 2147483648
  %v1612 = vxor.u32 %v1610, 2147483648
  %v1613 = vmul.f32 %v1611, 1.442695
  %v1614 = vpow.pop %v1613
  %v1615 = vmul.f32 %v1612, 1.442695
  %v1616 = vpow.pop %v1615
  %v1617 = vadd.f32 %v1614, 1.0
  %v1618 = vadd.f32 %v1616, 1.0
  %v1619 = vrcp.pop %v1617
  %v1620 = vmul.f32 1.0, %v1619
  %v1621 = vrcp.pop %v1618
  %v1622 = vmul.f32 1.0, %v1621
  %v1623 = vtanh.pop %v1609
  %v1624 = vtanh.pop %v1610
  %v1625 = vmul.f32 %v1620, %v1537
  %v1626 = vmul.f32 %v1622, %v1538
  %1629 = vrot.lane.b32.xlu0 %v1623, 32
  %v1630 = vpop.permute.xlu0 %1629
  %1631 = vrot.lane.b32.xlu0 %v1624, 32
  %v1632 = vpop.permute.xlu0 %1631
  %v1635 = vmul.f32 %v1620, %v1630
  %v1636 = vmul.f32 %v1622, %v1632
  %1639 = vrot.lane.b32.xlu0 %v1635, 32
  %v1640 = vpop.permute.xlu0 %1639
  %1641 = vrot.lane.b32.xlu0 %v1636, 32
  %v1642 = vpop.permute.xlu0 %1641
  %v1645 = vadd.f32 %v1625, %v1640
  %v1646 = vadd.f32 %v1626, %v1642
  %v1647 = vtanh.pop %v1645
  %v1648 = vtanh.pop %v1646
  %1651 = vrot.lane.b32.xlu0 %v1647, 32
  %v1652 = vpop.permute.xlu0 %1651
  %1653 = vrot.lane.b32.xlu0 %v1648, 32
  %v1654 = vpop.permute.xlu0 %1653
  %v1657 = vmul.f32 %v1620, %v1652
  %v1658 = vmul.f32 %v1622, %v1654
  %1661 = vrot.lane.b32.xlu0 %v1657, 64
  %v1662 = vpop.permute.xlu0 %1661
  %1663 = vrot.lane.b32.xlu0 %v1658, 64
  %v1664 = vpop.permute.xlu0 %1663
  %1667 = vst.msk [vmem:[#allocation2 + $0x10] sm:$0xff] %vm166, %v1662
  %1668 = vst.msk [vmem:[#allocation2 + $0x18] sm:$0xff] %vm166, %v1664
  %v1669 = vpack.c.bf16 %v1658, %v1657
  %1671 = vrot.lane.b32.xlu0 %v1669, 64
  %v1672 = vpop.permute.xlu0 %1671
  %v1674 = vsel %vm166, %v1672, 0
  %1676 = vmatprep.subr.bf16.mxu0 0
  %1677 = vmatpush1.bf16.msra.mxu0 %v1456
  %1678 = vmatprep.subr.bf16.mxu0 0
  %1679 = vmatpush1.bf16.msra.mxu0 %v1457
  %1680 = vmatprep.subr.bf16.mxu0 0
  %1681 = vmatpush1.bf16.msra.mxu0 0
  %1682 = vmatprep.subr.bf16.mxu0 0
  %1683 = vmatpush1.bf16.msra.mxu0 0
  %1684 = vmatprep.subr.bf16.mxu0 0
  %1685 = vmatpush1.bf16.msra.mxu0 0
  %1686 = vmatprep.subr.bf16.mxu0 0
  %1687 = vmatpush1.bf16.msra.mxu0 0
  %1688 = vmatprep.subr.bf16.mxu0 0
  %1689 = vmatpush1.bf16.msra.mxu0 0
  %1690 = vmatprep.subr.bf16.mxu0 0
  %1691 = vmatpush1.bf16.msra.mxu0 0
  %1692 = vmatprep.subr.bf16.mxu0 0
  %1693 = vmatpush1.bf16.msra.mxu0 0
  %1694 = vmatprep.subr.bf16.mxu0 0
  %1695 = vmatpush1.bf16.msra.mxu0 0
  %1696 = vmatprep.subr.bf16.mxu0 0
  %1697 = vmatpush1.bf16.msra.mxu0 0
  %1698 = vmatprep.subr.bf16.mxu0 0
  %1699 = vmatpush1.bf16.msra.mxu0 0
  %1700 = vmatprep.subr.bf16.mxu0 0
  %1701 = vmatpush1.bf16.msra.mxu0 0
  %1702 = vmatprep.subr.bf16.mxu0 0
  %1703 = vmatpush1.bf16.msra.mxu0 0
  %1704 = vmatprep.subr.bf16.mxu0 0
  %1705 = vmatpush1.bf16.msra.mxu0 0
  %1706 = vmatprep.subr.bf16.mxu0 0
  %1707 = vmatpush1.bf16.msra.mxu0 0
  %1708 = vmatprep.mubr.bf16.mxu0 0
  %1709 = vmatmul.mubr.bf16.gmra.mrb[0].mxu0 %v1674
  %v1710 = vpop.f32.mrb[0].mxu0
  %v1711 = vadd.f32 0.0, %v1710
  %v1712 = vpop.f32.mrb[0].mxu0
  %v1713 = vpop.f32.mrb[0].mxu0
  %v1714 = vadd.f32 0.0, %v1713
  %v1715 = vpop.f32.mrb[0].mxu0
  %1716 = vdwg.mxu0
  %v1717 = vadd.f32 %v1434, %v1711
  %v1718 = vadd.f32 %v1437, %v1714
  %v1719 = vxor.u32 %v1717, 2147483648
  %v1720 = vxor.u32 %v1718, 2147483648
  %v1721 = vmul.f32 %v1719, 1.442695
  %v1722 = vpow.pop %v1721
  %v1723 = vmul.f32 %v1720, 1.442695
  %v1724 = vpow.pop %v1723
  %v1725 = vadd.f32 %v1722, 1.0
  %v1726 = vadd.f32 %v1724, 1.0
  %v1727 = vrcp.pop %v1725
  %v1728 = vmul.f32 1.0, %v1727
  %v1729 = vrcp.pop %v1726
  %v1730 = vmul.f32 1.0, %v1729
  %v1731 = vtanh.pop %v1717
  %v1732 = vtanh.pop %v1718
  %v1733 = vmul.f32 %v1728, %v1645
  %v1734 = vmul.f32 %v1730, %v1646
  %1737 = vrot.lane.b32.xlu0 %v1731, 32
  %v1738 = vpop.permute.xlu0 %1737
  %1739 = vrot.lane.b32.xlu0 %v1732, 32
  %v1740 = vpop.permute.xlu0 %1739
  %v1743 = vmul.f32 %v1728, %v1738
  %v1744 = vmul.f32 %v1730, %v1740
  %1747 = vrot.lane.b32.xlu0 %v1743, 32
  %v1748 = vpop.permute.xlu0 %1747
  %1749 = vrot.lane.b32.xlu0 %v1744, 32
  %v1750 = vpop.permute.xlu0 %1749
  %v1753 = vadd.f32 %v1733, %v1748
  %v1754 = vadd.f32 %v1734, %v1750
  %v1755 = vtanh.pop %v1753
  %v1756 = vtanh.pop %v1754
  %1759 = vrot.lane.b32.xlu0 %v1755, 32
  %v1760 = vpop.permute.xlu0 %1759
  %1761 = vrot.lane.b32.xlu0 %v1756, 32
  %v1762 = vpop.permute.xlu0 %1761
  %v1765 = vmul.f32 %v1728, %v1760
  %v1766 = vmul.f32 %v1730, %v1762
  %1769 = vrot.lane.b32.xlu0 %v1765, 64
  %v1770 = vpop.permute.xlu0 %1769
  %1771 = vrot.lane.b32.xlu0 %v1766, 64
  %v1772 = vpop.permute.xlu0 %1771
  %1775 = vst.msk [vmem:[#allocation2 + $0x20] sm:$0xff] %vm166, %v1770
  %1776 = vst.msk [vmem:[#allocation2 + $0x28] sm:$0xff] %vm166, %v1772
  %v1777 = vpack.c.bf16 %v1766, %v1765
  %1779 = vrot.lane.b32.xlu0 %v1777, 64
  %v1780 = vpop.permute.xlu0 %1779
  %v1782 = vsel %vm166, %v1780, 0
  %1784 = vmatprep.subr.bf16.mxu0 0
  %1785 = vmatpush1.bf16.msra.mxu0 %v1456
  %1786 = vmatprep.subr.bf16.mxu0 0
  %1787 = vmatpush1.bf16.msra.mxu0 %v1457
  %1788 = vmatprep.subr.bf16.mxu0 0
  %1789 = vmatpush1.bf16.msra.mxu0 0
  %1790 = vmatprep.subr.bf16.mxu0 0
  %1791 = vmatpush1.bf16.msra.mxu0 0
  %1792 = vmatprep.subr.bf16.mxu0 0
  %1793 = vmatpush1.bf16.msra.mxu0 0
  %1794 = vmatprep.subr.bf16.mxu0 0
  %1795 = vmatpush1.bf16.msra.mxu0 0
  %1796 = vmatprep.subr.bf16.mxu0 0
  %1797 = vmatpush1.bf16.msra.mxu0 0
  %1798 = vmatprep.subr.bf16.mxu0 0
  %1799 = vmatpush1.bf16.msra.mxu0 0
  %1800 = vmatprep.subr.bf16.mxu0 0
  %1801 = vmatpush1.bf16.msra.mxu0 0
  %1802 = vmatprep.subr.bf16.mxu0 0
  %1803 = vmatpush1.bf16.msra.mxu0 0
  %1804 = vmatprep.subr.bf16.mxu0 0
  %1805 = vmatpush1.bf16.msra.mxu0 0
  %1806 = vmatprep.subr.bf16.mxu0 0
  %1807 = vmatpush1.bf16.msra.mxu0 0
  %1808 = vmatprep.subr.bf16.mxu0 0
  %1809 = vmatpush1.bf16.msra.mxu0 0
  %1810 = vmatprep.subr.bf16.mxu0 0
  %1811 = vmatpush1.bf16.msra.mxu0 0
  %1812 = vmatprep.subr.bf16.mxu0 0
  %1813 = vmatpush1.bf16.msra.mxu0 0
  %1814 = vmatprep.subr.bf16.mxu0 0
  %1815 = vmatpush1.bf16.msra.mxu0 0
  %1816 = vmatprep.mubr.bf16.mxu0 0
  %1817 = vmatmul.mubr.bf16.gmra.mrb[0].mxu0 %v1782
  %v1818 = vpop.f32.mrb[0].mxu0
  %v1819 = vadd.f32 0.0, %v1818
  %v1820 = vpop.f32.mrb[0].mxu0
  %v1821 = vpop.f32.mrb[0].mxu0
  %v1822 = vadd.f32 0.0, %v1821
  %v1823 = vpop.f32.mrb[0].mxu0
  %1824 = vdwg.mxu0
  %v1825 = vadd.f32 %v1442, %v1819
  %v1826 = vadd.f32 %v1445, %v1822
  %v1827 = vxor.u32 %v1825, 2147483648
  %v1828 = vxor.u32 %v1826, 2147483648
  %v1829 = vmul.f32 %v1827, 1.442695
  %v1830 = vpow.pop %v1829
  %v1831 = vmul.f32 %v1828, 1.442695
  %v1832 = vpow.pop %v1831
  %v1833 = vadd.f32 %v1830, 1.0
  %v1834 = vadd.f32 %v1832, 1.0
  %v1835 = vrcp.pop %v1833
  %v1836 = vmul.f32 1.0, %v1835
  %v1837 = vrcp.pop %v1834
  %v1838 = vmul.f32 1.0, %v1837
  %v1839 = vtanh.pop %v1825
  %v1840 = vtanh.pop %v1826
  %v1841 = vmul.f32 %v1836, %v1753
  %v1842 = vmul.f32 %v1838, %v1754
  %1845 = vrot.lane.b32.xlu0 %v1839, 32
  %v1846 = vpop.permute.xlu0 %1845
  %1847 = vrot.lane.b32.xlu0 %v1840, 32
  %v1848 = vpop.permute.xlu0 %1847
  %v1851 = vmul.f32 %v1836, %v1846
  %v1852 = vmul.f32 %v1838, %v1848
  %1855 = vrot.lane.b32.xlu0 %v1851, 32
  %v1856 = vpop.permute.xlu0 %1855
  %1857 = vrot.lane.b32.xlu0 %v1852, 32
  %v1858 = vpop.permute.xlu0 %1857
  %v1861 = vadd.f32 %v1841, %v1856
  %v1862 = vadd.f32 %v1842, %v1858
  %v1863 = vtanh.pop %v1861
  %v1864 = vtanh.pop %v1862
  %1867 = vrot.lane.b32.xlu0 %v1863, 32
  %v1868 = vpop.permute.xlu0 %1867
  %1869 = vrot.lane.b32.xlu0 %v1864, 32
  %v1870 = vpop.permute.xlu0 %1869
  %v1873 = vmul.f32 %v1836, %v1868
  %v1874 = vmul.f32 %v1838, %v1870
  %1877 = vrot.lane.b32.xlu0 %v1873, 64
  %v1878 = vpop.permute.xlu0 %1877
  %1879 = vrot.lane.b32.xlu0 %v1874, 64
  %v1880 = vpop.permute.xlu0 %1879
  %1883 = vst.msk [vmem:[#allocation2 + $0x30] sm:$0xff] %vm166, %v1878
  %1884 = vst.msk [vmem:[#allocation2 + $0x38] sm:$0xff] %vm166, %v1880
  %v1885 = vld [vmem:[#allocation2] sm:$0xff]
  %v1886 = vld [vmem:[#allocation2 + $0x8] sm:$0xff]
  %v1887 = vld [vmem:[#allocation2 + $0x10] sm:$0xff]
  %v1888 = vld [vmem:[#allocation2 + $0x18] sm:$0xff]
  %v1889 = vld [vmem:[#allocation2 + $0x20] sm:$0xff]
  %v1890 = vld [vmem:[#allocation2 + $0x28] sm:$0xff]
  %v1891 = vld [vmem:[#allocation2 + $0x30] sm:$0xff]
  %v1892 = vld [vmem:[#allocation2 + $0x38] sm:$0xff]
  %v1893 = vld [vmem:[%s10] sm:$0xf]
  %v1894 = vld [vmem:[%s10 + $0x4] sm:$0xf]
  %v1895 = vld [vmem:[%s10 + $0x8] sm:$0xf]
  %v1896 = vld [vmem:[%s10 + $0xc] sm:$0xf]
  %v1897 = vld [vmem:[%s11] sm:$0xf]
  %v1898 = vld [vmem:[%s11 + $0x4] sm:$0xf]
  %v1899 = vld [vmem:[%s11 + $0x8] sm:$0xf]
  %v1900 = vld [vmem:[%s11 + $0xc] sm:$0xf]
  %v1901 = vld [vmem:[%s12] sm:$0x1]
  %v1902 = vpack.c.bf16 %v1886, %v1885
  %v1903 = vpack.c.bf16 %v1888, %v1887
  %v1904 = vpack.c.bf16 %v1890, %v1889
  %v1905 = vpack.c.bf16 %v1892, %v1891
  %v1907 = vlaneseq
  %v1908 = vshrl.u32 %v1907, 7
  %v1909 = vsub.s32 0, %v1908
  %v1910 = vrot.slane %v1901, %v1909
  %v1916 = vunpack.c.l.b16 %v1893
  %v1917 = vunpack.c.l.b16 %v1894
  %v1918 = vunpack.c.l.b16 %v1895
  %v1919 = vunpack.c.l.b16 %v1896
  %v1920 = vpack.c.b16 %v1917, %v1916
  %v1921 = vpack.c.b16 %v1919, %v1918
  %v1925 = vsel %vm166, %v1902, 0
  %v1928 = vsel %vm166, %v1903, 0
  %v1931 = vsel %vm166, %v1904, 0
  %v1934 = vsel %vm166, %v1905, 0
  %1936 = vmatprep.subr.bf16.mxu0 0
  %1937 = vmatpush1.bf16.msra.mxu0 %v1920
  %1938 = vmatprep.subr.bf16.mxu0 0
  %1939 = vmatpush1.bf16.msra.mxu0 %v1921
  %1940 = vmatprep.subr.bf16.mxu0 0
  %1941 = vmatpush1.bf16.msra.mxu0 0
  %1942 = vmatprep.subr.bf16.mxu0 0
  %1943 = vmatpush1.bf16.msra.mxu0 0
  %1944 = vmatprep.subr.bf16.mxu0 0
  %1945 = vmatpush1.bf16.msra.mxu0 0
  %1946 = vmatprep.subr.bf16.mxu0 0
  %1947 = vmatpush1.bf16.msra.mxu0 0
  %1948 = vmatprep.subr.bf16.mxu0 0
  %1949 = vmatpush1.bf16.msra.mxu0 0
  %1950 = vmatprep.subr.bf16.mxu0 0
  %1951 = vmatpush1.bf16.msra.mxu0 0
  %1952 = vmatprep.subr.bf16.mxu0 0
  %1953 = vmatpush1.bf16.msra.mxu0 0
  %1954 = vmatprep.subr.bf16.mxu0 0
  %1955 = vmatpush1.bf16.msra.mxu0 0
  %1956 = vmatprep.subr.bf16.mxu0 0
  %1957 = vmatpush1.bf16.msra.mxu0 0
  %1958 = vmatprep.subr.bf16.mxu0 0
  %1959 = vmatpush1.bf16.msra.mxu0 0
  %1960 = vmatprep.subr.bf16.mxu0 0
  %1961 = vmatpush1.bf16.msra.mxu0 0
  %1962 = vmatprep.subr.bf16.mxu0 0
  %1963 = vmatpush1.bf16.msra.mxu0 0
  %1964 = vmatprep.subr.bf16.mxu0 0
  %1965 = vmatpush1.bf16.msra.mxu0 0
  %1966 = vmatprep.subr.bf16.mxu0 0
  %1967 = vmatpush1.bf16.msra.mxu0 0
  %1968 = vmatprep.mubr.bf16.mxu0 0
  %1969 = vmatmul.mubr.bf16.gmra.mrb[0].mxu0 %v1925
  %v1970 = vpop.f32.mrb[0].mxu0
  %v1971 = vadd.f32 %v1910, %v1970
  %v1972 = vpop.f32.mrb[0].mxu0
  %v1973 = vpop.f32.mrb[0].mxu0
  %v1974 = vadd.f32 %v1910, %v1973
  %v1975 = vpop.f32.mrb[0].mxu0
  %1976 = vmatprep.mubr.bf16.mxu0 0
  %1977 = vmatmul.mubr.bf16.gmra.mrb[0].mxu0 %v1928
  %v1978 = vpop.f32.mrb[0].mxu0
  %v1979 = vadd.f32 %v1910, %v1978
  %v1980 = vpop.f32.mrb[0].mxu0
  %v1981 = vpop.f32.mrb[0].mxu0
  %v1982 = vadd.f32 %v1910, %v1981
  %v1983 = vpop.f32.mrb[0].mxu0
  %1984 = vmatprep.mubr.bf16.mxu0 0
  %1985 = vmatmul.mubr.bf16.gmra.mrb[0].mxu0 %v1931
  %v1986 = vpop.f32.mrb[0].mxu0
  %v1987 = vadd.f32 %v1910, %v1986
  %v1988 = vpop.f32.mrb[0].mxu0
  %v1989 = vpop.f32.mrb[0].mxu0
  %v1990 = vadd.f32 %v1910, %v1989
  %v1991 = vpop.f32.mrb[0].mxu0
  %1992 = vmatprep.mubr.bf16.mxu0 0
  %1993 = vmatmul.mubr.bf16.gmra.mrb[0].mxu0 %v1934
  %v1994 = vpop.f32.mrb[0].mxu0
  %v1995 = vadd.f32 %v1910, %v1994
  %v1996 = vpop.f32.mrb[0].mxu0
  %v1997 = vpop.f32.mrb[0].mxu0
  %v1998 = vadd.f32 %v1910, %v1997
  %v1999 = vpop.f32.mrb[0].mxu0
  %2000 = vdwg.mxu0
  %v2005 = vunpack.c.l.b16 %v1897
  %v2006 = vunpack.c.l.b16 %v1898
  %v2007 = vunpack.c.l.b16 %v1899
  %v2008 = vunpack.c.l.b16 %v1900
  %v2009 = vpack.c.b16 %v2006, %v2005
  %v2010 = vpack.c.b16 %v2008, %v2007
  %2013 = vmatprep.subr.bf16.mxu0 0
  %2014 = vmatpush1.bf16.msra.mxu0 %v2009
  %2015 = vmatprep.subr.bf16.mxu0 0
  %2016 = vmatpush1.bf16.msra.mxu0 %v2010
  %2017 = vmatprep.subr.bf16.mxu0 0
  %2018 = vmatpush1.bf16.msra.mxu0 0
  %2019 = vmatprep.subr.bf16.mxu0 0
  %2020 = vmatpush1.bf16.msra.mxu0 0
  %2021 = vmatprep.subr.bf16.mxu0 0
  %2022 = vmatpush1.bf16.msra.mxu0 0
  %2023 = vmatprep.subr.bf16.mxu0 0
  %2024 = vmatpush1.bf16.msra.mxu0 0
  %2025 = vmatprep.subr.bf16.mxu0 0
  %2026 = vmatpush1.bf16.msra.mxu0 0
  %2027 = vmatprep.subr.bf16.mxu0 0
  %2028 = vmatpush1.bf16.msra.mxu0 0
  %2029 = vmatprep.subr.bf16.mxu0 0
  %2030 = vmatpush1.bf16.msra.mxu0 0
  %2031 = vmatprep.subr.bf16.mxu0 0
  %2032 = vmatpush1.bf16.msra.mxu0 0
  %2033 = vmatprep.subr.bf16.mxu0 0
  %2034 = vmatpush1.bf16.msra.mxu0 0
  %2035 = vmatprep.subr.bf16.mxu0 0
  %2036 = vmatpush1.bf16.msra.mxu0 0
  %2037 = vmatprep.subr.bf16.mxu0 0
  %2038 = vmatpush1.bf16.msra.mxu0 0
  %2039 = vmatprep.subr.bf16.mxu0 0
  %2040 = vmatpush1.bf16.msra.mxu0 0
  %2041 = vmatprep.subr.bf16.mxu0 0
  %2042 = vmatpush1.bf16.msra.mxu0 0
  %2043 = vmatprep.subr.bf16.mxu0 0
  %2044 = vmatpush1.bf16.msra.mxu0 0
  %2045 = vmatprep.mubr.bf16.mxu0 0
  %2046 = vmatmul.mubr.bf16.gmra.mrb[0].mxu0 %v168
  %v2047 = vpop.f32.mrb[0].mxu0
  %v2048 = vadd.f32 0.0, %v2047
  %v2049 = vpop.f32.mrb[0].mxu0
  %v2050 = vpop.f32.mrb[0].mxu0
  %v2051 = vadd.f32 0.0, %v2050
  %v2052 = vpop.f32.mrb[0].mxu0
  %2053 = vmatprep.mubr.bf16.mxu0 0
  %2054 = vmatmul.mubr.bf16.gmra.mrb[0].mxu0 %v168
  %v2055 = vpop.f32.mrb[0].mxu0
  %v2056 = vadd.f32 0.0, %v2055
  %v2057 = vpop.f32.mrb[0].mxu0
  %v2058 = vpop.f32.mrb[0].mxu0
  %v2059 = vadd.f32 0.0, %v2058
  %v2060 = vpop.f32.mrb[0].mxu0
  %2061 = vdwg.mxu0
  %v2062 = vadd.f32 %v1971, %v2048
  %v2063 = vadd.f32 %v1974, %v2051
  %v2064 = vadd.f32 %v1979, %v2056
  %v2065 = vadd.f32 %v1982, %v2059
  %v2066 = vxor.u32 %v2062, 2147483648
  %v2067 = vxor.u32 %v2063, 2147483648
  %v2068 = vxor.u32 %v2064, 2147483648
  %v2069 = vxor.u32 %v2065, 2147483648
  %v2070 = vmul.f32 %v2066, 1.442695
  %v2071 = vpow.pop %v2070
  %v2072 = vmul.f32 %v2067, 1.442695
  %v2073 = vpow.pop %v2072
  %v2074 = vmul.f32 %v2068, 1.442695
  %v2075 = vpow.pop %v2074
  %v2076 = vmul.f32 %v2069, 1.442695
  %v2077 = vpow.pop %v2076
  %v2078 = vadd.f32 %v2071, 1.0
  %v2079 = vadd.f32 %v2073, 1.0
  %v2080 = vadd.f32 %v2075, 1.0
  %v2081 = vadd.f32 %v2077, 1.0
  %v2082 = vrcp.pop %v2078
  %v2083 = vmul.f32 1.0, %v2082
  %v2084 = vrcp.pop %v2079
  %v2085 = vmul.f32 1.0, %v2084
  %v2086 = vrcp.pop %v2080
  %v2087 = vmul.f32 1.0, %v2086
  %v2088 = vrcp.pop %v2081
  %v2089 = vmul.f32 1.0, %v2088
  %v2090 = vtanh.pop %v2062
  %v2091 = vtanh.pop %v2063
  %v2092 = vtanh.pop %v2064
  %v2093 = vtanh.pop %v2065
  %v2094 = vmul.f32 %v2083, 0.0
  %v2095 = vmul.f32 %v2085, 0.0
  %v2096 = vmul.f32 %v2087, 0.0
  %v2097 = vmul.f32 %v2089, 0.0
  %2102 = vrot.lane.b32.xlu0 %v2090, 32
  %v2103 = vpop.permute.xlu0 %2102
  %2104 = vrot.lane.b32.xlu0 %v2091, 32
  %v2105 = vpop.permute.xlu0 %2104
  %2106 = vrot.lane.b32.xlu0 %v2092, 32
  %v2107 = vpop.permute.xlu0 %2106
  %2108 = vrot.lane.b32.xlu0 %v2093, 32
  %v2109 = vpop.permute.xlu0 %2108
  %v2114 = vmul.f32 %v2083, %v2103
  %v2115 = vmul.f32 %v2085, %v2105
  %v2116 = vmul.f32 %v2087, %v2107
  %v2117 = vmul.f32 %v2089, %v2109
  %2122 = vrot.lane.b32.xlu0 %v2114, 32
  %v2123 = vpop.permute.xlu0 %2122
  %2124 = vrot.lane.b32.xlu0 %v2115, 32
  %v2125 = vpop.permute.xlu0 %2124
  %2126 = vrot.lane.b32.xlu0 %v2116, 32
  %v2127 = vpop.permute.xlu0 %2126
  %2128 = vrot.lane.b32.xlu0 %v2117, 32
  %v2129 = vpop.permute.xlu0 %2128
  %v2134 = vadd.f32 %v2094, %v2123
  %v2135 = vadd.f32 %v2095, %v2125
  %v2136 = vadd.f32 %v2096, %v2127
  %v2137 = vadd.f32 %v2097, %v2129
  %v2138 = vtanh.pop %v2134
  %v2139 = vtanh.pop %v2135
  %v2140 = vtanh.pop %v2136
  %v2141 = vtanh.pop %v2137
  %2146 = vrot.lane.b32.xlu0 %v2138, 32
  %v2147 = vpop.permute.xlu0 %2146
  %2148 = vrot.lane.b32.xlu0 %v2139, 32
  %v2149 = vpop.permute.xlu0 %2148
  %2150 = vrot.lane.b32.xlu0 %v2140, 32
  %v2151 = vpop.permute.xlu0 %2150
  %2152 = vrot.lane.b32.xlu0 %v2141, 32
  %v2153 = vpop.permute.xlu0 %2152
  %v2158 = vmul.f32 %v2083, %v2147
  %v2159 = vmul.f32 %v2085, %v2149
  %v2160 = vmul.f32 %v2087, %v2151
  %v2161 = vmul.f32 %v2089, %v2153
  %2166 = vrot.lane.b32.xlu0 %v2158, 64
  %v2167 = vpop.permute.xlu0 %2166
  %2168 = vrot.lane.b32.xlu0 %v2159, 64
  %v2169 = vpop.permute.xlu0 %2168
  %2170 = vrot.lane.b32.xlu0 %v2160, 64
  %v2171 = vpop.permute.xlu0 %2170
  %2172 = vrot.lane.b32.xlu0 %v2161, 64
  %v2173 = vpop.permute.xlu0 %2172
  %2178 = vst.msk [vmem:[#allocation2] sm:$0xff] %vm166, %v2167
  %2179 = vst.msk [vmem:[#allocation2 + $0x8] sm:$0xff] %vm166, %v2169
  %2180 = vst.msk [vmem:[#allocation2 + $0x10] sm:$0xff] %vm166, %v2171
  %2181 = vst.msk [vmem:[#allocation2 + $0x18] sm:$0xff] %vm166, %v2173
  %v2182 = vpack.c.bf16 %v2159, %v2158
  %v2183 = vpack.c.bf16 %v2161, %v2160
  %2186 = vrot.lane.b32.xlu0 %v2182, 64
  %v2187 = vpop.permute.xlu0 %2186
  %2188 = vrot.lane.b32.xlu0 %v2183, 64
  %v2189 = vpop.permute.xlu0 %2188
  %v2191 = vsel %vm166, %v2187, 0
  %v2194 = vsel %vm166, %v2189, 0
  %2196 = vmatprep.subr.bf16.mxu0 0
  %2197 = vmatpush1.bf16.msra.mxu0 %v2009
  %2198 = vmatprep.subr.bf16.mxu0 0
  %2199 = vmatpush1.bf16.msra.mxu0 %v2010
  %2200 = vmatprep.subr.bf16.mxu0 0
  %2201 = vmatpush1.bf16.msra.mxu0 0
  %2202 = vmatprep.subr.bf16.mxu0 0
  %2203 = vmatpush1.bf16.msra.mxu0 0
  %2204 = vmatprep.subr.bf16.mxu0 0
  %2205 = vmatpush1.bf16.msra.mxu0 0
  %2206 = vmatprep.subr.bf16.mxu0 0
  %2207 = vmatpush1.bf16.msra.mxu0 0
  %2208 = vmatprep.subr.bf16.mxu0 0
  %2209 = vmatpush1.bf16.msra.mxu0 0
  %2210 = vmatprep.subr.bf16.mxu0 0
  %2211 = vmatpush1.bf16.msra.mxu0 0
  %2212 = vmatprep.subr.bf16.mxu0 0
  %2213 = vmatpush1.bf16.msra.mxu0 0
  %2214 = vmatprep.subr.bf16.mxu0 0
  %2215 = vmatpush1.bf16.msra.mxu0 0
  %2216 = vmatprep.subr.bf16.mxu0 0
  %2217 = vmatpush1.bf16.msra.mxu0 0
  %2218 = vmatprep.subr.bf16.mxu0 0
  %2219 = vmatpush1.bf16.msra.mxu0 0
  %2220 = vmatprep.subr.bf16.mxu0 0
  %2221 = vmatpush1.bf16.msra.mxu0 0
  %2222 = vmatprep.subr.bf16.mxu0 0
  %2223 = vmatpush1.bf16.msra.mxu0 0
  %2224 = vmatprep.subr.bf16.mxu0 0
  %2225 = vmatpush1.bf16.msra.mxu0 0
  %2226 = vmatprep.subr.bf16.mxu0 0
  %2227 = vmatpush1.bf16.msra.mxu0 0
  %2228 = vmatprep.mubr.bf16.mxu0 0
  %2229 = vmatmul.mubr.bf16.gmra.mrb[0].mxu0 %v2191
  %v2230 = vpop.f32.mrb[0].mxu0
  %v2231 = vadd.f32 0.0, %v2230
  %v2232 = vpop.f32.mrb[0].mxu0
  %v2233 = vpop.f32.mrb[0].mxu0
  %v2234 = vadd.f32 0.0, %v2233
  %v2235 = vpop.f32.mrb[0].mxu0
  %2236 = vmatprep.mubr.bf16.mxu0 0
  %2237 = vmatmul.mubr.bf16.gmra.mrb[0].mxu0 %v2194
  %v2238 = vpop.f32.mrb[0].mxu0
  %v2239 = vadd.f32 0.0, %v2238
  %v2240 = vpop.f32.mrb[0].mxu0
  %v2241 = vpop.f32.mrb[0].mxu0
  %v2242 = vadd.f32 0.0, %v2241
  %v2243 = vpop.f32.mrb[0].mxu0
  %2244 = vdwg.mxu0
  %v2245 = vadd.f32 %v1987, %v2231
  %v2246 = vadd.f32 %v1990, %v2234
  %v2247 = vadd.f32 %v1995, %v2239
  %v2248 = vadd.f32 %v1998, %v2242
  %v2249 = vxor.u32 %v2245, 2147483648
  %v2250 = vxor.u32 %v2246, 2147483648
  %v2251 = vxor.u32 %v2247, 2147483648
  %v2252 = vxor.u32 %v2248, 2147483648
  %v2253 = vmul.f32 %v2249, 1.442695
  %v2254 = vpow.pop %v2253
  %v2255 = vmul.f32 %v2250, 1.442695
  %v2256 = vpow.pop %v2255
  %v2257 = vmul.f32 %v2251, 1.442695
  %v2258 = vpow.pop %v2257
  %v2259 = vmul.f32 %v2252, 1.442695
  %v2260 = vpow.pop %v2259
  %v2261 = vadd.f32 %v2254, 1.0
  %v2262 = vadd.f32 %v2256, 1.0
  %v2263 = vadd.f32 %v2258, 1.0
  %v2264 = vadd.f32 %v2260, 1.0
  %v2265 = vrcp.pop %v2261
  %v2266 = vmul.f32 1.0, %v2265
  %v2267 = vrcp.pop %v2262
  %v2268 = vmul.f32 1.0, %v2267
  %v2269 = vrcp.pop %v2263
  %v2270 = vmul.f32 1.0, %v2269
  %v2271 = vrcp.pop %v2264
  %v2272 = vmul.f32 1.0, %v2271
  %v2273 = vtanh.pop %v2245
  %v2274 = vtanh.pop %v2246
  %v2275 = vtanh.pop %v2247
  %v2276 = vtanh.pop %v2248
  %v2277 = vmul.f32 %v2266, %v2134
  %v2278 = vmul.f32 %v2268, %v2135
  %v2279 = vmul.f32 %v2270, %v2136
  %v2280 = vmul.f32 %v2272, %v2137
  %2285 = vrot.lane.b32.xlu0 %v2273, 32
  %v2286 = vpop.permute.xlu0 %2285
  %2287 = vrot.lane.b32.xlu0 %v2274, 32
  %v2288 = vpop.permute.xlu0 %2287
  %2289 = vrot.lane.b32.xlu0 %v2275, 32
  %v2290 = vpop.permute.xlu0 %2289
  %2291 = vrot.lane.b32.xlu0 %v2276, 32
  %v2292 = vpop.permute.xlu0 %2291
  %v2297 = vmul.f32 %v2266, %v2286
  %v2298 = vmul.f32 %v2268, %v2288
  %v2299 = vmul.f32 %v2270, %v2290
  %v2300 = vmul.f32 %v2272, %v2292
  %2305 = vrot.lane.b32.xlu0 %v2297, 32
  %v2306 = vpop.permute.xlu0 %2305
  %2307 = vrot.lane.b32.xlu0 %v2298, 32
  %v2308 = vpop.permute.xlu0 %2307
  %2309 = vrot.lane.b32.xlu0 %v2299, 32
  %v2310 = vpop.permute.xlu0 %2309
  %2311 = vrot.lane.b32.xlu0 %v2300, 32
  %v2312 = vpop.permute.xlu0 %2311
  %v2317 = vadd.f32 %v2277, %v2306
  %v2318 = vadd.f32 %v2278, %v2308
  %v2319 = vadd.f32 %v2279, %v2310
  %v2320 = vadd.f32 %v2280, %v2312
  %v2321 = vtanh.pop %v2317
  %v2322 = vtanh.pop %v2318
  %v2323 = vtanh.pop %v2319
  %v2324 = vtanh.pop %v2320
  %2329 = vrot.lane.b32.xlu0 %v2321, 32
  %v2330 = vpop.permute.xlu0 %2329
  %2331 = vrot.lane.b32.xlu0 %v2322, 32
  %v2332 = vpop.permute.xlu0 %2331
  %2333 = vrot.lane.b32.xlu0 %v2323, 32
  %v2334 = vpop.permute.xlu0 %2333
  %2335 = vrot.lane.b32.xlu0 %v2324, 32
  %v2336 = vpop.permute.xlu0 %2335
  %v2341 = vmul.f32 %v2266, %v2330
  %v2342 = vmul.f32 %v2268, %v2332
  %v2343 = vmul.f32 %v2270, %v2334
  %v2344 = vmul.f32 %v2272, %v2336
  %2349 = vrot.lane.b32.xlu0 %v2341, 64
  %v2350 = vpop.permute.xlu0 %2349
  %2351 = vrot.lane.b32.xlu0 %v2342, 64
  %v2352 = vpop.permute.xlu0 %2351
  %2353 = vrot.lane.b32.xlu0 %v2343, 64
  %v2354 = vpop.permute.xlu0 %2353
  %2355 = vrot.lane.b32.xlu0 %v2344, 64
  %v2356 = vpop.permute.xlu0 %2355
  %2361 = vst.msk [vmem:[#allocation2 + $0x20] sm:$0xff] %vm166, %v2350
  %2362 = vst.msk [vmem:[#allocation2 + $0x28] sm:$0xff] %vm166, %v2352
  %2363 = vst.msk [vmem:[#allocation2 + $0x30] sm:$0xff] %vm166, %v2354
  %2364 = vst.msk [vmem:[#allocation2 + $0x38] sm:$0xff] %vm166, %v2356
  %v2365 = vld [vmem:[#allocation2] sm:$0xff]
  %v2366 = vld [vmem:[#allocation2 + $0x8] sm:$0xff]
  %v2367 = vld [vmem:[#allocation2 + $0x10] sm:$0xff]
  %v2368 = vld [vmem:[#allocation2 + $0x18] sm:$0xff]
  %v2369 = vld [vmem:[#allocation2 + $0x20] sm:$0xff]
  %v2370 = vld [vmem:[#allocation2 + $0x28] sm:$0xff]
  %v2371 = vld [vmem:[#allocation2 + $0x30] sm:$0xff]
  %v2372 = vld [vmem:[#allocation2 + $0x38] sm:$0xff]
  %v2373 = vadd.f32 %v2365, %v1332
  %v2374 = vadd.f32 %v2366, %v1333
  %v2375 = vadd.f32 %v2367, %v1334
  %v2376 = vadd.f32 %v2368, %v1335
  %v2377 = vadd.f32 %v2369, %v1336
  %v2378 = vadd.f32 %v2370, %v1337
  %v2379 = vadd.f32 %v2371, %v1338
  %v2380 = vadd.f32 %v2372, %v1339
  %2381 = vst.msk [vmem:[%s13] sm:$0xff] %vm166, %v2373
  %2382 = vst.msk [vmem:[%s13 + $0x8] sm:$0xff] %vm166, %v2374
  %2383 = vst.msk [vmem:[%s13 + $0x10] sm:$0xff] %vm166, %v2375
  %2384 = vst.msk [vmem:[%s13 + $0x18] sm:$0xff] %vm166, %v2376
  %2385 = vst.msk [vmem:[%s13 + $0x20] sm:$0xff] %vm166, %v2377
  %2386 = vst.msk [vmem:[%s13 + $0x28] sm:$0xff] %vm166, %v2378
  %2387 = vst.msk [vmem:[%s13 + $0x30] sm:$0xff] %vm166, %v2379
  %2388 = vst.msk [vmem:[%s13 + $0x38] sm:$0xff] %vm166, %v2380
  // Predicated region
  $region54: #{residual_drnn_forward.1} parent=0 // pred_check
    _
  $region55: #{residual_drnn_forward.1} parent=0 // pred_check_branch
    %2390 = sbr.rel (0) target = $region57
  $region56: #{residual_drnn_forward.1} parent=0 // pred_region
    _
  $region57: #{residual_drnn_forward.1} parent=0 // pred_fallthru
    _
  // Predicated region
  $region58: #{residual_drnn_forward.1} parent=0 // pred_check
    _
  $region59: #{residual_drnn_forward.1} parent=0 // pred_check_branch
    %2392 = sbr.rel (0) target = $region61
  $region60: #{residual_drnn_forward.1} parent=0 // pred_region
    _
  $region61: #{residual_drnn_forward.1} parent=0 // pred_fallthru
    _

</llo_original>
